<compile_context>
chip_gen: v7x
topology: tpu7x:2x2x1
jax: 0.10.0
libtpu: 0.0.40
codegen_flags: <defaults>
</compile_context>

<pallas_src>
import jax
import jax.numpy as jnp
from jax.experimental import pallas as pl
from jax.experimental.pallas import tpu as pltpu


def _make_kernel(num_layers, B, H, TB, U):
    n_rest = num_layers - 1

    def kernel(pre0_ref, whh0_ref, *args):
        rest = args[:3 * n_rest]                  # (wih_l, whh_l, bias_l) for l >= 1
        out_ref = args[3 * n_rest]                # (TB, B, H) f32: h_last per timestep
        h_s, c_s = args[3 * n_rest + 1:]          # (num_layers, B, H) f32 VMEM scratch

        @pl.when(pl.program_id(0) == 0)
        def _():
            h_s[...] = jnp.zeros_like(h_s)
            c_s[...] = jnp.zeros_like(c_s)

        def cell(gates, c_prev):
            # Gate columns were permuted in the wrapper to [i | f | o | g]:
            # one sigmoid over 3H lanes + one tanh over H lanes.
            sig = jax.nn.sigmoid(gates[:, :3 * H])
            g = jnp.tanh(gates[:, 3 * H:])
            i = sig[:, 0:H]
            f = sig[:, H:2 * H]
            o = sig[:, 2 * H:3 * H]
            c_new = f * c_prev + i * g
            h_new = o * jnp.tanh(c_new)
            return h_new, c_new

        # Chunk-entry state: read VMEM scratch once, then register-carried.
        h0 = tuple(h_s[l] for l in range(num_layers))
        c0 = tuple(c_s[l] for l in range(num_layers))

        def step_block(blk, carry):
            hs, cs = carry
            hs = list(hs)
            cs = list(cs)
            base = pl.multiple_of(blk * U, U)
            for u in range(U):   # partial unroll: lets LLO overlap MXU of t+1 with cell of t
                tau = base + u
                # Layer 0: hoisted input GEMM + bias streamed in as bf16; only
                # the recurrent matmul stays on the serial path (bf16 MXU, f32 acc).
                gates = (pre0_ref[tau].astype(jnp.float32)
                         + jnp.dot(hs[0].astype(jnp.bfloat16), whh0_ref[...],
                                   preferred_element_type=jnp.float32))
                h_new, c_new = cell(gates, cs[0])
                hs[0], cs[0] = h_new, c_new
                inp = h_new

                # Layers 1..L-1: two bf16 dots into one f32 accumulator (no concat).
                for l in range(1, num_layers):
                    wih_ref = rest[3 * (l - 1)]
                    whh_ref = rest[3 * (l - 1) + 1]
                    b_ref = rest[3 * (l - 1) + 2]
                    gates = (jnp.dot(inp.astype(jnp.bfloat16), wih_ref[...],
                                     preferred_element_type=jnp.float32)
                             + jnp.dot(hs[l].astype(jnp.bfloat16), whh_ref[...],
                                       preferred_element_type=jnp.float32)
                             + b_ref[...])
                    h_new, c_new = cell(gates, cs[l])
                    hs[l], cs[l] = h_new, c_new
                    inp = h_new

                # NOTE: for real configs pick H as a multiple of 128 so this store
                # is lane-dense (unmasked vst).
                out_ref[tau] = inp
                # NOTE: nn.LSTM inter-layer dropout is identity at inference; skipped.
            return tuple(hs), tuple(cs)

        hs, cs = jax.lax.fori_loop(0, TB // U, step_block, (h0, c0))

        # Persist chunk-exit state once for the next grid step.
        for l in range(num_layers):
            h_s[l] = hs[l]
            c_s[l] = cs[l]

    return kernel


def _permute_gates(w, H):
    # PyTorch-style gate order [i, f, g, o] -> [i, f, o, g] along the 4H axis,
    # so sigmoid gates are contiguous in [0:3H] and tanh gate in [3H:4H].
    return jnp.concatenate([w[..., :2 * H], w[..., 3 * H:4 * H], w[..., 2 * H:3 * H]],
                           axis=-1)


def conditional_autoregressive_lstm(x, context, params, *, C, P, num_layers,
                                    hidden_size, time_block=128, unroll=4):
    """x: (B, C, T) f32, context: (B, context_size, T) f32 -> (B, C, T, P) f32."""
    B, _, T = x.shape
    H = hidden_size
    PC = P * C

    # glue: l_in permutes + ConditionalLayerLSTM's concat along feature dim
    xt = jnp.transpose(x, (2, 0, 1)).astype(jnp.float32)        # (T, B, C)
    ct = jnp.transpose(context, (2, 0, 1)).astype(jnp.float32)  # (T, B, ctx)
    xc = jnp.concatenate([xt, ct], axis=-1)                     # (T, B, C+ctx)

    # Permute gate columns once in the wrapper (weights + biases).
    layer_params = [(_permute_gates(wih, H), _permute_gates(whh, H), _permute_gates(b, H))
                    for (wih, whh, b) in params["layers"]]
    wih0, whh0, b0 = layer_params[0]

    # Hoisted dense GEMM: layer-0 input contribution for all timesteps at once.
    pre0 = jnp.einsum("tbi,ig->tbg", xc, wih0) + b0             # (T, B, 4H) f32

    # bf16 on the MXU / HBM side; accumulation and cell math stay f32.
    pre0 = pre0.astype(jnp.bfloat16)
    whh0 = whh0.astype(jnp.bfloat16)
    rest = [(wih.astype(jnp.bfloat16), whh.astype(jnp.bfloat16), b)
            for (wih, whh, b) in layer_params[1:]]

    # Derive the time-chunk size from the per-generation VMEM budget
    # (64 MiB on v7x, 128 MiB on v5e/v6e), leaving headroom for weights/state.
    try:
        vmem_cap = int(pltpu.get_tpu_info().vmem_capacity_bytes)
    except Exception:
        vmem_cap = 64 << 20
    per_t_bytes = 2 * (B * 4 * H * 2) + 2 * (B * H * 4)   # dbl-buffered pre0(bf16)+out(f32)
    tb_budget = max(unroll, int(0.45 * vmem_cap) // max(per_t_bytes, 1))
    TB = max(unroll, min(time_block, tb_budget, -(-T // unroll) * unroll))
    TB = max(unroll, (TB // unroll) * unroll)
    n_chunks = -(-T // TB)
    T_pad = n_chunks * TB
    if T_pad != T:
        # Padded tail steps run through the recurrence; state is never read after
        # the last real step, so this is harmless.
        pre0 = jnp.pad(pre0, ((0, T_pad - T), (0, 0), (0, 0)))

    flat = [pre0, whh0]
    in_specs = [
        pl.BlockSpec((TB, B, 4 * H), lambda c: (c, 0, 0)),
        pl.BlockSpec((H, 4 * H), lambda c: (0, 0)),
    ]
    for (wih, whh, b) in rest:
        flat += [wih, whh, b]
        in_specs += [pl.BlockSpec((H, 4 * H), lambda c: (0, 0)),
                     pl.BlockSpec((H, 4 * H), lambda c: (0, 0)),
                     pl.BlockSpec((1, 4 * H), lambda c: (0, 0))]
    # NOTE: constant-index weight blocks could be single-buffered
    # (pipeline_mode=pl.Buffered(1)) to halve resident weight VMEM on v7x.

    # VMEM budget: resident weights + double-buffered in/out blocks + state.
    weight_bytes = whh0.size * 2 + sum(w1.size * 2 + w2.size * 2 + b.size * 4
                                       for (w1, w2, b) in rest)
    block_bytes = 2 * (TB * B * 4 * H * 2) + 2 * (TB * B * H * 4)
    state_bytes = 2 * num_layers * B * H * 4
    vmem_limit = weight_bytes + block_bytes + state_bytes + (8 << 20)
    vmem_limit = int(min(max(vmem_limit, 16 << 20), int(0.75 * vmem_cap)))

    h_seq = pl.pallas_call(
        _make_kernel(num_layers, B, H, TB, unroll),
        out_shape=jax.ShapeDtypeStruct((T_pad, B, H), jnp.float32),
        grid=(n_chunks,),
        in_specs=in_specs,
        out_specs=pl.BlockSpec((TB, B, H), lambda c: (c, 0, 0)),
        scratch_shapes=[pltpu.VMEM((num_layers, B, H), jnp.float32),
                        pltpu.VMEM((num_layers, B, H), jnp.float32)],
        compiler_params=pltpu.CompilerParams(
            dimension_semantics=("arbitrary",),
            vmem_limit_bytes=vmem_limit),
    )(*flat)

    h_seq = h_seq[:T]  # drop time padding

    # Hoisted output projection (dense, MXU-friendly GEMM) + AutoregressiveShift
    # + reshape/permute, all outside the serial kernel.
    wout, bout, ft = params["wout"], params["bout"], params["first_token"]
    y = jnp.einsum("tbh,hp->tbp", h_seq[:T - 1], wout) + bout   # (T-1, B, PC)
    first = jnp.broadcast_to(ft[None], (1, B, PC))
    out = jnp.concatenate([first, y], axis=0)                   # (T, B, PC)
    out = out.reshape(T, B, C, P)
    return jnp.transpose(out, (1, 2, 0, 3))                     # (B, C, T, P)


def init_params(key, *, C, P, num_layers, hidden_size, context_size):
    H = hidden_size
    PC = P * C
    bound = 1.0 / jnp.sqrt(H)
    keys = jax.random.split(key, 4 * num_layers + 4)
    ki = iter(range(len(keys)))

    layers = []
    in_size = C + context_size
    for _ in range(num_layers):
        wih = jax.random.uniform(keys[next(ki)], (in_size, 4 * H), jnp.float32, -bound, bound)
        whh = jax.random.uniform(keys[next(ki)], (H, 4 * H), jnp.float32, -bound, bound)
        b_ih = jax.random.uniform(keys[next(ki)], (1, 4 * H), jnp.float32, -bound, bound)
        b_hh = jax.random.uniform(keys[next(ki)], (1, 4 * H), jnp.float32, -bound, bound)
        layers.append((wih, whh, b_ih + b_hh))
        in_size = H

    wout = jax.random.uniform(keys[next(ki)], (H, PC), jnp.float32, -bound, bound)
    bout = jax.random.uniform(keys[next(ki)], (1, PC), jnp.float32, -bound, bound)
    ft_bound = jnp.sqrt(6.0 / (1 + PC))
    ft = jax.random.uniform(keys[next(ki)], (1, PC), jnp.float32, -ft_bound, ft_bound)
    return {"layers": layers, "wout": wout, "bout": bout, "first_token": ft}


def reference_forward(x, context, params, *, C, P, num_layers, hidden_size):
    """Pure-JAX reference mirroring PyTorch semantics, for correctness checking."""
    B, _, T = x.shape
    H = hidden_size
    PC = P * C
    xc = jnp.concatenate([jnp.transpose(x, (2, 0, 1)),
                          jnp.transpose(context, (2, 0, 1))], axis=-1)

    inp = xc
    for (wih, whh, b) in params["layers"]:
        def step(carry, x_t, wih=wih, whh=whh, b=b):
            h, c = carry
            gates = x_t @ wih + h @ whh + b
            i, f, g, o = jnp.split(gates, 4, axis=-1)
            i, f, o = jax.nn.sigmoid(i), jax.nn.sigmoid(f), jax.nn.sigmoid(o)
            g = jnp.tanh(g)
            c = f * c + i * g
            h = o * jnp.tanh(c)
            return (h, c), h
        init = (jnp.zeros((B, H), jnp.float32), jnp.zeros((B, H), jnp.float32))
        _, inp = jax.lax.scan(step, init, inp)

    y = inp @ params["wout"] + params["bout"]                       # (T, B, PC)
    first = jnp.broadcast_to(params["first_token"][None], (1, B, PC))
    y = jnp.concatenate([first, y[:-1]], axis=0)                    # AutoregressiveShift
    y = y.reshape(T, B, C, P)
    return jnp.transpose(y, (1, 2, 0, 3))


if __name__ == "__main__":
    B, C, T = 2, 4, 8
    context_size = 3
    hidden_size = 32
    P = 5
    num_layers = 2

    key = jax.random.PRNGKey(0)
    kx, kc, kp = jax.random.split(key, 3)
    x = jax.random.normal(kx, (B, C, T), jnp.float32)
    context = jax.random.normal(kc, (B, context_size, T), jnp.float32)
    params = init_params(kp, C=C, P=P, num_layers=num_layers,
                         hidden_size=hidden_size, context_size=context_size)

    out = conditional_autoregressive_lstm(
        x, context, params, C=C, P=P, num_layers=num_layers, hidden_size=hidden_size)
    out = jax.block_until_ready(out)
    assert out.shape == (B, C, T, P), out.shape

    ref = jax.block_until_ready(reference_forward(
        x, context, params, C=C, P=P, num_layers=num_layers, hidden_size=hidden_size))
    # bf16 matmul operands / bf16 pre0 stream -> loosened tolerance vs the f32 reference.
    max_err = float(jnp.max(jnp.abs(out - ref)))
    assert jnp.allclose(out, ref, atol=5e-2, rtol=5e-2), max_err

    print("KERNEL_OK")
</pallas_src>

<mosaic_0001>
module attributes {stable_mosaic.version = 11 : i64} {
  func.func @kernel(%arg0: i32, %arg1: memref<8x2x128xbf16, #tpu.memory_space<vmem>>, %arg2: memref<32x128xbf16, #tpu.memory_space<vmem>>, %arg3: memref<32x128xbf16, #tpu.memory_space<vmem>>, %arg4: memref<32x128xbf16, #tpu.memory_space<vmem>>, %arg5: memref<1x128xf32, #tpu.memory_space<vmem>>, %arg6: memref<8x2x32xf32, #tpu.memory_space<vmem>>, %arg7: memref<2x2x32xf32, #tpu.memory_space<vmem>>, %arg8: memref<2x2x32xf32, #tpu.memory_space<vmem>>) attributes {dimension_semantics = [#tpu.dimension_semantics<arbitrary>], iteration_bounds = array<i64: 1>, scalar_prefetch = 0 : i64, scratch_operands = 2 : i64, tpu.core_type = #tpu.core_type<tc>, window_params = [{transform_indices = @transform_0, window_bounds = array<i64: 8, 2, 128>}, {pipeline_mode = #tpu.pipeline_mode<synchronous>, transform_indices = @transform_1, window_bounds = array<i64: 32, 128>}, {pipeline_mode = #tpu.pipeline_mode<synchronous>, transform_indices = @transform_2, window_bounds = array<i64: 32, 128>}, {pipeline_mode = #tpu.pipeline_mode<synchronous>, transform_indices = @transform_3, window_bounds = array<i64: 32, 128>}, {pipeline_mode = #tpu.pipeline_mode<synchronous>, transform_indices = @transform_4, window_bounds = array<i64: 1, 128>}, {transform_indices = @transform_5, window_bounds = array<i64: 8, 2, 32>}]} {
    %c0_i32 = arith.constant 0 : i32
    %0 = arith.cmpi eq, %arg0, %c0_i32 : i32
    %1 = arith.extui %0 : i1 to i32
    %c0_i32_0 = arith.constant 0 : i32
    %2 = arith.cmpi ne, %1, %c0_i32_0 : i32
    scf.if %2 {
      %cst = arith.constant 0.000000e+00 : f32
      %25 = vector.broadcast %cst : f32 to vector<2x2x32xf32>
      %c0_25 = arith.constant 0 : index
      %c0_26 = arith.constant 0 : index
      %c0_27 = arith.constant 0 : index
      %26 = vector.load %arg7[%c0_25, %c0_26, %c0_27] : memref<2x2x32xf32, #tpu.memory_space<vmem>>, vector<2x2x32xf32>
      tpu.vector_store %arg7[%c0_25, %c0_26, %c0_27], %25 {strides = array<i32>} : memref<2x2x32xf32, #tpu.memory_space<vmem>>, vector<2x2x32xf32>,
      %cst_28 = arith.constant 0.000000e+00 : f32
      %27 = vector.broadcast %cst_28 : f32 to vector<2x2x32xf32>
      %c0_29 = arith.constant 0 : index
      %c0_30 = arith.constant 0 : index
      %c0_31 = arith.constant 0 : index
      %28 = vector.load %arg8[%c0_29, %c0_30, %c0_31] : memref<2x2x32xf32, #tpu.memory_space<vmem>>, vector<2x2x32xf32>
      tpu.vector_store %arg8[%c0_29, %c0_30, %c0_31], %27 {strides = array<i32>} : memref<2x2x32xf32, #tpu.memory_space<vmem>>, vector<2x2x32xf32>,
    } else {
    }
    %c0 = arith.constant 0 : index
    %c0_1 = arith.constant 0 : index
    %c0_2 = arith.constant 0 : index
    %3 = vector.load %arg7[%c0, %c0_1, %c0_2] : memref<2x2x32xf32, #tpu.memory_space<vmem>>, vector<1x2x32xf32>
    %4 = vector.shape_cast %3 : vector<1x2x32xf32> to vector<2x32xf32>
    %c1 = arith.constant 1 : index
    %c0_3 = arith.constant 0 : index
    %c0_4 = arith.constant 0 : index
    %5 = vector.load %arg7[%c1, %c0_3, %c0_4] : memref<2x2x32xf32, #tpu.memory_space<vmem>>, vector<1x2x32xf32>
    %6 = vector.shape_cast %5 : vector<1x2x32xf32> to vector<2x32xf32>
    %c0_5 = arith.constant 0 : index
    %c0_6 = arith.constant 0 : index
    %c0_7 = arith.constant 0 : index
    %7 = vector.load %arg8[%c0_5, %c0_6, %c0_7] : memref<2x2x32xf32, #tpu.memory_space<vmem>>, vector<1x2x32xf32>
    %8 = vector.shape_cast %7 : vector<1x2x32xf32> to vector<2x32xf32>
    %c1_8 = arith.constant 1 : index
    %c0_9 = arith.constant 0 : index
    %c0_10 = arith.constant 0 : index
    %9 = vector.load %arg8[%c1_8, %c0_9, %c0_10] : memref<2x2x32xf32, #tpu.memory_space<vmem>>, vector<1x2x32xf32>
    %10 = vector.shape_cast %9 : vector<1x2x32xf32> to vector<2x32xf32>
    %c0_i32_11 = arith.constant 0 : i32
    %c2_i32 = arith.constant 2 : i32
    %11 = arith.addi %c0_i32_11, %c2_i32 : i32
    %c1_i32 = arith.constant 1 : i32
    %12:4 = scf.for %arg9 = %c0_i32_11 to %11 step %c1_i32 iter_args(%arg10 = %4, %arg11 = %6, %arg12 = %8, %arg13 = %10) -> (vector<2x32xf32>, vector<2x32xf32>, vector<2x32xf32>, vector<2x32xf32>)  : i32 {
      %c4_i32 = arith.constant 4 : i32
      %25 = arith.muli %arg9, %c4_i32 : i32
      %26 = tpu.assume_multiple %25, 4 : i32
      %c0_i32_25 = arith.constant 0 : i32
      %27 = arith.addi %26, %c0_i32_25 : i32
      %28 = arith.index_cast %27 : i32 to index
      %c0_26 = arith.constant 0 : index
      %c0_27 = arith.constant 0 : index
      %29 = vector.load %arg1[%28, %c0_26, %c0_27] : memref<8x2x128xbf16, #tpu.memory_space<vmem>>, vector<1x2x128xbf16>
      %30 = vector.shape_cast %29 : vector<1x2x128xbf16> to vector<2x128xbf16>
      %31 = arith.extf %30 : vector<2x128xbf16> to vector<2x128xf32>
      %32 = arith.truncf %arg10 : vector<2x32xf32> to vector<2x32xbf16>
      %c0_28 = arith.constant 0 : index
      %c0_29 = arith.constant 0 : index
      %33 = vector.load %arg2[%c0_28, %c0_29] : memref<32x128xbf16, #tpu.memory_space<vmem>>, vector<32x128xbf16>
      %cst = arith.constant dense<0.000000e+00> : vector<2x128xf32>
      %34 = tpu.matmul %32, %33, %cst {dimension_numbers = #tpu.dot_dimension_numbers<[1], [0], [0], [1], [0, 0, 1, 1], [], []>} : vector<2x32xbf16>, vector<32x128xbf16>, vector<2x128xf32> -> vector<2x128xf32>
      %35 = arith.addf %31, %34 : vector<2x128xf32>
      %36 = vector.extract_strided_slice %35 {offsets = [0, 0], sizes = [2, 96], strides = [1, 1]} : vector<2x128xf32> to vector<2x96xf32>
      %37 = arith.negf %36 : vector<2x96xf32>
      %38 = math.exp %37 : vector<2x96xf32>
      %cst_30 = arith.constant 1.000000e+00 : f32
      %39 = vector.broadcast %cst_30 : f32 to vector<2x96xf32>
      %40 = arith.addf %39, %38 : vector<2x96xf32>
      %41 = arith.divf %39, %40 : vector<2x96xf32>
      %42 = vector.extract_strided_slice %35 {offsets = [0, 96], sizes = [2, 32], strides = [1, 1]} : vector<2x128xf32> to vector<2x32xf32>
      %43 = math.tanh %42 : vector<2x32xf32>
      %44 = vector.extract_strided_slice %41 {offsets = [0, 0], sizes = [2, 32], strides = [1, 1]} : vector<2x96xf32> to vector<2x32xf32>
      %45 = vector.extract_strided_slice %41 {offsets = [0, 32], sizes = [2, 32], strides = [1, 1]} : vector<2x96xf32> to vector<2x32xf32>
      %46 = vector.extract_strided_slice %41 {offsets = [0, 64], sizes = [2, 32], strides = [1, 1]} : vector<2x96xf32> to vector<2x32xf32>
      %47 = arith.mulf %45, %arg12 : vector<2x32xf32>
      %48 = arith.mulf %44, %43 : vector<2x32xf32>
      %49 = arith.addf %47, %48 : vector<2x32xf32>
      %50 = math.tanh %49 : vector<2x32xf32>
      %51 = arith.mulf %46, %50 : vector<2x32xf32>
      %52 = arith.truncf %51 : vector<2x32xf32> to vector<2x32xbf16>
      %c0_31 = arith.constant 0 : index
      %c0_32 = arith.constant 0 : index
      %53 = vector.load %arg3[%c0_31, %c0_32] : memref<32x128xbf16, #tpu.memory_space<vmem>>, vector<32x128xbf16>
      %cst_33 = arith.constant dense<0.000000e+00> : vector<2x128xf32>
      %54 = tpu.matmul %52, %53, %cst_33 {dimension_numbers = #tpu.dot_dimension_numbers<[1], [0], [0], [1], [0, 0, 1, 1], [], []>} : vector<2x32xbf16>, vector<32x128xbf16>, vector<2x128xf32> -> vector<2x128xf32>
      %55 = arith.truncf %arg11 : vector<2x32xf32> to vector<2x32xbf16>
      %c0_34 = arith.constant 0 : index
      %c0_35 = arith.constant 0 : index
      %56 = vector.load %arg4[%c0_34, %c0_35] : memref<32x128xbf16, #tpu.memory_space<vmem>>, vector<32x128xbf16>
      %cst_36 = arith.constant dense<0.000000e+00> : vector<2x128xf32>
      %57 = tpu.matmul %55, %56, %cst_36 {dimension_numbers = #tpu.dot_dimension_numbers<[1], [0], [0], [1], [0, 0, 1, 1], [], []>} : vector<2x32xbf16>, vector<32x128xbf16>, vector<2x128xf32> -> vector<2x128xf32>
      %58 = arith.addf %54, %57 : vector<2x128xf32>
      %c0_37 = arith.constant 0 : index
      %c0_38 = arith.constant 0 : index
      %59 = vector.load %arg5[%c0_37, %c0_38] : memref<1x128xf32, #tpu.memory_space<vmem>>, vector<1x128xf32>
      %60 = vector.broadcast %59 : vector<1x128xf32> to vector<2x128xf32>
      %61 = arith.addf %58, %60 : vector<2x128xf32>
      %62 = vector.extract_strided_slice %61 {offsets = [0, 0], sizes = [2, 96], strides = [1, 1]} : vector<2x128xf32> to vector<2x96xf32>
      %63 = arith.negf %62 : vector<2x96xf32>
      %64 = math.exp %63 : vector<2x96xf32>
      %cst_39 = arith.constant 1.000000e+00 : f32
      %65 = vector.broadcast %cst_39 : f32 to vector<2x96xf32>
      %66 = arith.addf %65, %64 : vector<2x96xf32>
      %67 = arith.divf %65, %66 : vector<2x96xf32>
      %68 = vector.extract_strided_slice %61 {offsets = [0, 96], sizes = [2, 32], strides = [1, 1]} : vector<2x128xf32> to vector<2x32xf32>
      %69 = math.tanh %68 : vector<2x32xf32>
      %70 = vector.extract_strided_slice %67 {offsets = [0, 0], sizes = [2, 32], strides = [1, 1]} : vector<2x96xf32> to vector<2x32xf32>
      %71 = vector.extract_strided_slice %67 {offsets = [0, 32], sizes = [2, 32], strides = [1, 1]} : vector<2x96xf32> to vector<2x32xf32>
      %72 = vector.extract_strided_slice %67 {offsets = [0, 64], sizes = [2, 32], strides = [1, 1]} : vector<2x96xf32> to vector<2x32xf32>
      %73 = arith.mulf %71, %arg13 : vector<2x32xf32>
      %74 = arith.mulf %70, %69 : vector<2x32xf32>
      %75 = arith.addf %73, %74 : vector<2x32xf32>
      %76 = math.tanh %75 : vector<2x32xf32>
      %77 = arith.mulf %72, %76 : vector<2x32xf32>
      %78 = arith.index_cast %27 : i32 to index
      %c0_40 = arith.constant 0 : index
      %c0_41 = arith.constant 0 : index
      %79 = vector.load %arg6[%78, %c0_40, %c0_41] : memref<8x2x32xf32, #tpu.memory_space<vmem>>, vector<1x2x32xf32>
      %80 = vector.shape_cast %79 : vector<1x2x32xf32> to vector<2x32xf32>
      %81 = vector.shape_cast %77 : vector<2x32xf32> to vector<1x2x32xf32>
      tpu.vector_store %arg6[%78, %c0_40, %c0_41], %81 {strides = array<i32>} : memref<8x2x32xf32, #tpu.memory_space<vmem>>, vector<1x2x32xf32>,
      %c1_i32_42 = arith.constant 1 : i32
      %82 = arith.addi %26, %c1_i32_42 : i32
      %83 = arith.index_cast %82 : i32 to index
      %c0_43 = arith.constant 0 : index
      %c0_44 = arith.constant 0 : index
      %84 = vector.load %arg1[%83, %c0_43, %c0_44] : memref<8x2x128xbf16, #tpu.memory_space<vmem>>, vector<1x2x128xbf16>
      %85 = vector.shape_cast %84 : vector<1x2x128xbf16> to vector<2x128xbf16>
      %86 = arith.extf %85 : vector<2x128xbf16> to vector<2x128xf32>
      %87 = arith.truncf %51 : vector<2x32xf32> to vector<2x32xbf16>
      %c0_45 = arith.constant 0 : index
      %c0_46 = arith.constant 0 : index
      %88 = vector.load %arg2[%c0_45, %c0_46] : memref<32x128xbf16, #tpu.memory_space<vmem>>, vector<32x128xbf16>
      %cst_47 = arith.constant dense<0.000000e+00> : vector<2x128xf32>
      %89 = tpu.matmul %87, %88, %cst_47 {dimension_numbers = #tpu.dot_dimension_numbers<[1], [0], [0], [1], [0, 0, 1, 1], [], []>} : vector<2x32xbf16>, vector<32x128xbf16>, vector<2x128xf32> -> vector<2x128xf32>
      %90 = arith.addf %86, %89 : vector<2x128xf32>
      %91 = vector.extract_strided_slice %90 {offsets = [0, 0], sizes = [2, 96], strides = [1, 1]} : vector<2x128xf32> to vector<2x96xf32>
      %92 = arith.negf %91 : vector<2x96xf32>
      %93 = math.exp %92 : vector<2x96xf32>
      %cst_48 = arith.constant 1.000000e+00 : f32
      %94 = vector.broadcast %cst_48 : f32 to vector<2x96xf32>
      %95 = arith.addf %94, %93 : vector<2x96xf32>
      %96 = arith.divf %94, %95 : vector<2x96xf32>
      %97 = vector.extract_strided_slice %90 {offsets = [0, 96], sizes = [2, 32], strides = [1, 1]} : vector<2x128xf32> to vector<2x32xf32>
      %98 = math.tanh %97 : vector<2x32xf32>
      %99 = vector.extract_strided_slice %96 {offsets = [0, 0], sizes = [2, 32], strides = [1, 1]} : vector<2x96xf32> to vector<2x32xf32>
      %100 = vector.extract_strided_slice %96 {offsets = [0, 32], sizes = [2, 32], strides = [1, 1]} : vector<2x96xf32> to vector<2x32xf32>
      %101 = vector.extract_strided_slice %96 {offsets = [0, 64], sizes = [2, 32], strides = [1, 1]} : vector<2x96xf32> to vector<2x32xf32>
      %102 = arith.mulf %100, %49 : vector<2x32xf32>
      %103 = arith.mulf %99, %98 : vector<2x32xf32>
      %104 = arith.addf %102, %103 : vector<2x32xf32>
      %105 = math.tanh %104 : vector<2x32xf32>
      %106 = arith.mulf %101, %105 : vector<2x32xf32>
      %107 = arith.truncf %106 : vector<2x32xf32> to vector<2x32xbf16>
      %c0_49 = arith.constant 0 : index
      %c0_50 = arith.constant 0 : index
      %108 = vector.load %arg3[%c0_49, %c0_50] : memref<32x128xbf16, #tpu.memory_space<vmem>>, vector<32x128xbf16>
      %cst_51 = arith.constant dense<0.000000e+00> : vector<2x128xf32>
      %109 = tpu.matmul %107, %108, %cst_51 {dimension_numbers = #tpu.dot_dimension_numbers<[1], [0], [0], [1], [0, 0, 1, 1], [], []>} : vector<2x32xbf16>, vector<32x128xbf16>, vector<2x128xf32> -> vector<2x128xf32>
      %110 = arith.truncf %77 : vector<2x32xf32> to vector<2x32xbf16>
      %c0_52 = arith.constant 0 : index
      %c0_53 = arith.constant 0 : index
      %111 = vector.load %arg4[%c0_52, %c0_53] : memref<32x128xbf16, #tpu.memory_space<vmem>>, vector<32x128xbf16>
      %cst_54 = arith.constant dense<0.000000e+00> : vector<2x128xf32>
      %112 = tpu.matmul %110, %111, %cst_54 {dimension_numbers = #tpu.dot_dimension_numbers<[1], [0], [0], [1], [0, 0, 1, 1], [], []>} : vector<2x32xbf16>, vector<32x128xbf16>, vector<2x128xf32> -> vector<2x128xf32>
      %113 = arith.addf %109, %112 : vector<2x128xf32>
      %c0_55 = arith.constant 0 : index
      %c0_56 = arith.constant 0 : index
      %114 = vector.load %arg5[%c0_55, %c0_56] : memref<1x128xf32, #tpu.memory_space<vmem>>, vector<1x128xf32>
      %115 = vector.broadcast %114 : vector<1x128xf32> to vector<2x128xf32>
      %116 = arith.addf %113, %115 : vector<2x128xf32>
      %117 = vector.extract_strided_slice %116 {offsets = [0, 0], sizes = [2, 96], strides = [1, 1]} : vector<2x128xf32> to vector<2x96xf32>
      %118 = arith.negf %117 : vector<2x96xf32>
      %119 = math.exp %118 : vector<2x96xf32>
      %cst_57 = arith.constant 1.000000e+00 : f32
      %120 = vector.broadcast %cst_57 : f32 to vector<2x96xf32>
      %121 = arith.addf %120, %119 : vector<2x96xf32>
      %122 = arith.divf %120, %121 : vector<2x96xf32>
      %123 = vector.extract_strided_slice %116 {offsets = [0, 96], sizes = [2, 32], strides = [1, 1]} : vector<2x128xf32> to vector<2x32xf32>
      %124 = math.tanh %123 : vector<2x32xf32>
      %125 = vector.extract_strided_slice %122 {offsets = [0, 0], sizes = [2, 32], strides = [1, 1]} : vector<2x96xf32> to vector<2x32xf32>
      %126 = vector.extract_strided_slice %122 {offsets = [0, 32], sizes = [2, 32], strides = [1, 1]} : vector<2x96xf32> to vector<2x32xf32>
      %127 = vector.extract_strided_slice %122 {offsets = [0, 64], sizes = [2, 32], strides = [1, 1]} : vector<2x96xf32> to vector<2x32xf32>
      %128 = arith.mulf %126, %75 : vector<2x32xf32>
      %129 = arith.mulf %125, %124 : vector<2x32xf32>
      %130 = arith.addf %128, %129 : vector<2x32xf32>
      %131 = math.tanh %130 : vector<2x32xf32>
      %132 = arith.mulf %127, %131 : vector<2x32xf32>
      %133 = arith.index_cast %82 : i32 to index
      %c0_58 = arith.constant 0 : index
      %c0_59 = arith.constant 0 : index
      %134 = vector.load %arg6[%133, %c0_58, %c0_59] : memref<8x2x32xf32, #tpu.memory_space<vmem>>, vector<1x2x32xf32>
      %135 = vector.shape_cast %134 : vector<1x2x32xf32> to vector<2x32xf32>
      %136 = vector.shape_cast %132 : vector<2x32xf32> to vector<1x2x32xf32>
      tpu.vector_store %arg6[%133, %c0_58, %c0_59], %136 {strides = array<i32>} : memref<8x2x32xf32, #tpu.memory_space<vmem>>, vector<1x2x32xf32>,
      %c2_i32_60 = arith.constant 2 : i32
      %137 = arith.addi %26, %c2_i32_60 : i32
      %138 = arith.index_cast %137 : i32 to index
      %c0_61 = arith.constant 0 : index
      %c0_62 = arith.constant 0 : index
      %139 = vector.load %arg1[%138, %c0_61, %c0_62] : memref<8x2x128xbf16, #tpu.memory_space<vmem>>, vector<1x2x128xbf16>
      %140 = vector.shape_cast %139 : vector<1x2x128xbf16> to vector<2x128xbf16>
      %141 = arith.extf %140 : vector<2x128xbf16> to vector<2x128xf32>
      %142 = arith.truncf %106 : vector<2x32xf32> to vector<2x32xbf16>
      %c0_63 = arith.constant 0 : index
      %c0_64 = arith.constant 0 : index
      %143 = vector.load %arg2[%c0_63, %c0_64] : memref<32x128xbf16, #tpu.memory_space<vmem>>, vector<32x128xbf16>
      %cst_65 = arith.constant dense<0.000000e+00> : vector<2x128xf32>
      %144 = tpu.matmul %142, %143, %cst_65 {dimension_numbers = #tpu.dot_dimension_numbers<[1], [0], [0], [1], [0, 0, 1, 1], [], []>} : vector<2x32xbf16>, vector<32x128xbf16>, vector<2x128xf32> -> vector<2x128xf32>
      %145 = arith.addf %141, %144 : vector<2x128xf32>
      %146 = vector.extract_strided_slice %145 {offsets = [0, 0], sizes = [2, 96], strides = [1, 1]} : vector<2x128xf32> to vector<2x96xf32>
      %147 = arith.negf %146 : vector<2x96xf32>
      %148 = math.exp %147 : vector<2x96xf32>
      %cst_66 = arith.constant 1.000000e+00 : f32
      %149 = vector.broadcast %cst_66 : f32 to vector<2x96xf32>
      %150 = arith.addf %149, %148 : vector<2x96xf32>
      %151 = arith.divf %149, %150 : vector<2x96xf32>
      %152 = vector.extract_strided_slice %145 {offsets = [0, 96], sizes = [2, 32], strides = [1, 1]} : vector<2x128xf32> to vector<2x32xf32>
      %153 = math.tanh %152 : vector<2x32xf32>
      %154 = vector.extract_strided_slice %151 {offsets = [0, 0], sizes = [2, 32], strides = [1, 1]} : vector<2x96xf32> to vector<2x32xf32>
      %155 = vector.extract_strided_slice %151 {offsets = [0, 32], sizes = [2, 32], strides = [1, 1]} : vector<2x96xf32> to vector<2x32xf32>
      %156 = vector.extract_strided_slice %151 {offsets = [0, 64], sizes = [2, 32], strides = [1, 1]} : vector<2x96xf32> to vector<2x32xf32>
      %157 = arith.mulf %155, %104 : vector<2x32xf32>
      %158 = arith.mulf %154, %153 : vector<2x32xf32>
      %159 = arith.addf %157, %158 : vector<2x32xf32>
      %160 = math.tanh %159 : vector<2x32xf32>
      %161 = arith.mulf %156, %160 : vector<2x32xf32>
      %162 = arith.truncf %161 : vector<2x32xf32> to vector<2x32xbf16>
      %c0_67 = arith.constant 0 : index
      %c0_68 = arith.constant 0 : index
      %163 = vector.load %arg3[%c0_67, %c0_68] : memref<32x128xbf16, #tpu.memory_space<vmem>>, vector<32x128xbf16>
      %cst_69 = arith.constant dense<0.000000e+00> : vector<2x128xf32>
      %164 = tpu.matmul %162, %163, %cst_69 {dimension_numbers = #tpu.dot_dimension_numbers<[1], [0], [0], [1], [0, 0, 1, 1], [], []>} : vector<2x32xbf16>, vector<32x128xbf16>, vector<2x128xf32> -> vector<2x128xf32>
      %165 = arith.truncf %132 : vector<2x32xf32> to vector<2x32xbf16>
      %c0_70 = arith.constant 0 : index
      %c0_71 = arith.constant 0 : index
      %166 = vector.load %arg4[%c0_70, %c0_71] : memref<32x128xbf16, #tpu.memory_space<vmem>>, vector<32x128xbf16>
      %cst_72 = arith.constant dense<0.000000e+00> : vector<2x128xf32>
      %167 = tpu.matmul %165, %166, %cst_72 {dimension_numbers = #tpu.dot_dimension_numbers<[1], [0], [0], [1], [0, 0, 1, 1], [], []>} : vector<2x32xbf16>, vector<32x128xbf16>, vector<2x128xf32> -> vector<2x128xf32>
      %168 = arith.addf %164, %167 : vector<2x128xf32>
      %c0_73 = arith.constant 0 : index
      %c0_74 = arith.constant 0 : index
      %169 = vector.load %arg5[%c0_73, %c0_74] : memref<1x128xf32, #tpu.memory_space<vmem>>, vector<1x128xf32>
      %170 = vector.broadcast %169 : vector<1x128xf32> to vector<2x128xf32>
      %171 = arith.addf %168, %170 : vector<2x128xf32>
      %172 = vector.extract_strided_slice %171 {offsets = [0, 0], sizes = [2, 96], strides = [1, 1]} : vector<2x128xf32> to vector<2x96xf32>
      %173 = arith.negf %172 : vector<2x96xf32>
      %174 = math.exp %173 : vector<2x96xf32>
      %cst_75 = arith.constant 1.000000e+00 : f32
      %175 = vector.broadcast %cst_75 : f32 to vector<2x96xf32>
      %176 = arith.addf %175, %174 : vector<2x96xf32>
      %177 = arith.divf %175, %176 : vector<2x96xf32>
      %178 = vector.extract_strided_slice %171 {offsets = [0, 96], sizes = [2, 32], strides = [1, 1]} : vector<2x128xf32> to vector<2x32xf32>
      %179 = math.tanh %178 : vector<2x32xf32>
      %180 = vector.extract_strided_slice %177 {offsets = [0, 0], sizes = [2, 32], strides = [1, 1]} : vector<2x96xf32> to vector<2x32xf32>
      %181 = vector.extract_strided_slice %177 {offsets = [0, 32], sizes = [2, 32], strides = [1, 1]} : vector<2x96xf32> to vector<2x32xf32>
      %182 = vector.extract_strided_slice %177 {offsets = [0, 64], sizes = [2, 32], strides = [1, 1]} : vector<2x96xf32> to vector<2x32xf32>
      %183 = arith.mulf %181, %130 : vector<2x32xf32>
      %184 = arith.mulf %180, %179 : vector<2x32xf32>
      %185 = arith.addf %183, %184 : vector<2x32xf32>
      %186 = math.tanh %185 : vector<2x32xf32>
      %187 = arith.mulf %182, %186 : vector<2x32xf32>
      %188 = arith.index_cast %137 : i32 to index
      %c0_76 = arith.constant 0 : index
      %c0_77 = arith.constant 0 : index
      %189 = vector.load %arg6[%188, %c0_76, %c0_77] : memref<8x2x32xf32, #tpu.memory_space<vmem>>, vector<1x2x32xf32>
      %190 = vector.shape_cast %189 : vector<1x2x32xf32> to vector<2x32xf32>
      %191 = vector.shape_cast %187 : vector<2x32xf32> to vector<1x2x32xf32>
      tpu.vector_store %arg6[%188, %c0_76, %c0_77], %191 {strides = array<i32>} : memref<8x2x32xf32, #tpu.memory_space<vmem>>, vector<1x2x32xf32>,
      %c3_i32 = arith.constant 3 : i32
      %192 = arith.addi %26, %c3_i32 : i32
      %193 = arith.index_cast %192 : i32 to index
      %c0_78 = arith.constant 0 : index
      %c0_79 = arith.constant 0 : index
      %194 = vector.load %arg1[%193, %c0_78, %c0_79] : memref<8x2x128xbf16, #tpu.memory_space<vmem>>, vector<1x2x128xbf16>
      %195 = vector.shape_cast %194 : vector<1x2x128xbf16> to vector<2x128xbf16>
      %196 = arith.extf %195 : vector<2x128xbf16> to vector<2x128xf32>
      %197 = arith.truncf %161 : vector<2x32xf32> to vector<2x32xbf16>
      %c0_80 = arith.constant 0 : index
      %c0_81 = arith.constant 0 : index
      %198 = vector.load %arg2[%c0_80, %c0_81] : memref<32x128xbf16, #tpu.memory_space<vmem>>, vector<32x128xbf16>
      %cst_82 = arith.constant dense<0.000000e+00> : vector<2x128xf32>
      %199 = tpu.matmul %197, %198, %cst_82 {dimension_numbers = #tpu.dot_dimension_numbers<[1], [0], [0], [1], [0, 0, 1, 1], [], []>} : vector<2x32xbf16>, vector<32x128xbf16>, vector<2x128xf32> -> vector<2x128xf32>
      %200 = arith.addf %196, %199 : vector<2x128xf32>
      %201 = vector.extract_strided_slice %200 {offsets = [0, 0], sizes = [2, 96], strides = [1, 1]} : vector<2x128xf32> to vector<2x96xf32>
      %202 = arith.negf %201 : vector<2x96xf32>
      %203 = math.exp %202 : vector<2x96xf32>
      %cst_83 = arith.constant 1.000000e+00 : f32
      %204 = vector.broadcast %cst_83 : f32 to vector<2x96xf32>
      %205 = arith.addf %204, %203 : vector<2x96xf32>
      %206 = arith.divf %204, %205 : vector<2x96xf32>
      %207 = vector.extract_strided_slice %200 {offsets = [0, 96], sizes = [2, 32], strides = [1, 1]} : vector<2x128xf32> to vector<2x32xf32>
      %208 = math.tanh %207 : vector<2x32xf32>
      %209 = vector.extract_strided_slice %206 {offsets = [0, 0], sizes = [2, 32], strides = [1, 1]} : vector<2x96xf32> to vector<2x32xf32>
      %210 = vector.extract_strided_slice %206 {offsets = [0, 32], sizes = [2, 32], strides = [1, 1]} : vector<2x96xf32> to vector<2x32xf32>
      %211 = vector.extract_strided_slice %206 {offsets = [0, 64], sizes = [2, 32], strides = [1, 1]} : vector<2x96xf32> to vector<2x32xf32>
      %212 = arith.mulf %210, %159 : vector<2x32xf32>
      %213 = arith.mulf %209, %208 : vector<2x32xf32>
      %214 = arith.addf %212, %213 : vector<2x32xf32>
      %215 = math.tanh %214 : vector<2x32xf32>
      %216 = arith.mulf %211, %215 : vector<2x32xf32>
      %217 = arith.truncf %216 : vector<2x32xf32> to vector<2x32xbf16>
      %c0_84 = arith.constant 0 : index
      %c0_85 = arith.constant 0 : index
      %218 = vector.load %arg3[%c0_84, %c0_85] : memref<32x128xbf16, #tpu.memory_space<vmem>>, vector<32x128xbf16>
      %cst_86 = arith.constant dense<0.000000e+00> : vector<2x128xf32>
      %219 = tpu.matmul %217, %218, %cst_86 {dimension_numbers = #tpu.dot_dimension_numbers<[1], [0], [0], [1], [0, 0, 1, 1], [], []>} : vector<2x32xbf16>, vector<32x128xbf16>, vector<2x128xf32> -> vector<2x128xf32>
      %220 = arith.truncf %187 : vector<2x32xf32> to vector<2x32xbf16>
      %c0_87 = arith.constant 0 : index
      %c0_88 = arith.constant 0 : index
      %221 = vector.load %arg4[%c0_87, %c0_88] : memref<32x128xbf16, #tpu.memory_space<vmem>>, vector<32x128xbf16>
      %cst_89 = arith.constant dense<0.000000e+00> : vector<2x128xf32>
      %222 = tpu.matmul %220, %221, %cst_89 {dimension_numbers = #tpu.dot_dimension_numbers<[1], [0], [0], [1], [0, 0, 1, 1], [], []>} : vector<2x32xbf16>, vector<32x128xbf16>, vector<2x128xf32> -> vector<2x128xf32>
      %223 = arith.addf %219, %222 : vector<2x128xf32>
      %c0_90 = arith.constant 0 : index
      %c0_91 = arith.constant 0 : index
      %224 = vector.load %arg5[%c0_90, %c0_91] : memref<1x128xf32, #tpu.memory_space<vmem>>, vector<1x128xf32>
      %225 = vector.broadcast %224 : vector<1x128xf32> to vector<2x128xf32>
      %226 = arith.addf %223, %225 : vector<2x128xf32>
      %227 = vector.extract_strided_slice %226 {offsets = [0, 0], sizes = [2, 96], strides = [1, 1]} : vector<2x128xf32> to vector<2x96xf32>
      %228 = arith.negf %227 : vector<2x96xf32>
      %229 = math.exp %228 : vector<2x96xf32>
      %cst_92 = arith.constant 1.000000e+00 : f32
      %230 = vector.broadcast %cst_92 : f32 to vector<2x96xf32>
      %231 = arith.addf %230, %229 : vector<2x96xf32>
      %232 = arith.divf %230, %231 : vector<2x96xf32>
      %233 = vector.extract_strided_slice %226 {offsets = [0, 96], sizes = [2, 32], strides = [1, 1]} : vector<2x128xf32> to vector<2x32xf32>
      %234 = math.tanh %233 : vector<2x32xf32>
      %235 = vector.extract_strided_slice %232 {offsets = [0, 0], sizes = [2, 32], strides = [1, 1]} : vector<2x96xf32> to vector<2x32xf32>
      %236 = vector.extract_strided_slice %232 {offsets = [0, 32], sizes = [2, 32], strides = [1, 1]} : vector<2x96xf32> to vector<2x32xf32>
      %237 = vector.extract_strided_slice %232 {offsets = [0, 64], sizes = [2, 32], strides = [1, 1]} : vector<2x96xf32> to vector<2x32xf32>
      %238 = arith.mulf %236, %185 : vector<2x32xf32>
      %239 = arith.mulf %235, %234 : vector<2x32xf32>
      %240 = arith.addf %238, %239 : vector<2x32xf32>
      %241 = math.tanh %240 : vector<2x32xf32>
      %242 = arith.mulf %237, %241 : vector<2x32xf32>
      %243 = arith.index_cast %192 : i32 to index
      %c0_93 = arith.constant 0 : index
      %c0_94 = arith.constant 0 : index
      %244 = vector.load %arg6[%243, %c0_93, %c0_94] : memref<8x2x32xf32, #tpu.memory_space<vmem>>, vector<1x2x32xf32>
      %245 = vector.shape_cast %244 : vector<1x2x32xf32> to vector<2x32xf32>
      %246 = vector.shape_cast %242 : vector<2x32xf32> to vector<1x2x32xf32>
      tpu.vector_store %arg6[%243, %c0_93, %c0_94], %246 {strides = array<i32>} : memref<8x2x32xf32, #tpu.memory_space<vmem>>, vector<1x2x32xf32>,
      scf.yield %216, %242, %214, %240 : vector<2x32xf32>, vector<2x32xf32>, vector<2x32xf32>, vector<2x32xf32>
    }
    %c2_i32_12 = arith.constant 2 : i32
    %c0_13 = arith.constant 0 : index
    %c0_14 = arith.constant 0 : index
    %c0_15 = arith.constant 0 : index
    %13 = vector.load %arg7[%c0_13, %c0_14, %c0_15] : memref<2x2x32xf32, #tpu.memory_space<vmem>>, vector<1x2x32xf32>
    %14 = vector.shape_cast %13 : vector<1x2x32xf32> to vector<2x32xf32>
    %15 = vector.shape_cast %12#0 : vector<2x32xf32> to vector<1x2x32xf32>
    tpu.vector_store %arg7[%c0_13, %c0_14, %c0_15], %15 {strides = array<i32>} : memref<2x2x32xf32, #tpu.memory_space<vmem>>, vector<1x2x32xf32>,
    %c0_16 = arith.constant 0 : index
    %c0_17 = arith.constant 0 : index
    %c0_18 = arith.constant 0 : index
    %16 = vector.load %arg8[%c0_16, %c0_17, %c0_18] : memref<2x2x32xf32, #tpu.memory_space<vmem>>, vector<1x2x32xf32>
    %17 = vector.shape_cast %16 : vector<1x2x32xf32> to vector<2x32xf32>
    %18 = vector.shape_cast %12#2 : vector<2x32xf32> to vector<1x2x32xf32>
    tpu.vector_store %arg8[%c0_16, %c0_17, %c0_18], %18 {strides = array<i32>} : memref<2x2x32xf32, #tpu.memory_space<vmem>>, vector<1x2x32xf32>,
    %c1_19 = arith.constant 1 : index
    %c0_20 = arith.constant 0 : index
    %c0_21 = arith.constant 0 : index
    %19 = vector.load %arg7[%c1_19, %c0_20, %c0_21] : memref<2x2x32xf32, #tpu.memory_space<vmem>>, vector<1x2x32xf32>
    %20 = vector.shape_cast %19 : vector<1x2x32xf32> to vector<2x32xf32>
    %21 = vector.shape_cast %12#1 : vector<2x32xf32> to vector<1x2x32xf32>
    tpu.vector_store %arg7[%c1_19, %c0_20, %c0_21], %21 {strides = array<i32>} : memref<2x2x32xf32, #tpu.memory_space<vmem>>, vector<1x2x32xf32>,
    %c1_22 = arith.constant 1 : index
    %c0_23 = arith.constant 0 : index
    %c0_24 = arith.constant 0 : index
    %22 = vector.load %arg8[%c1_22, %c0_23, %c0_24] : memref<2x2x32xf32, #tpu.memory_space<vmem>>, vector<1x2x32xf32>
    %23 = vector.shape_cast %22 : vector<1x2x32xf32> to vector<2x32xf32>
    %24 = vector.shape_cast %12#3 : vector<2x32xf32> to vector<1x2x32xf32>
    tpu.vector_store %arg8[%c1_22, %c0_23, %c0_24], %24 {strides = array<i32>} : memref<2x2x32xf32, #tpu.memory_space<vmem>>, vector<1x2x32xf32>,
    return
  }
  func.func @transform_0(%arg0: i32) -> (i32, i32, i32) {
    %c0_i32 = arith.constant 0 : i32
    %c0_i32_0 = arith.constant 0 : i32
    %c0_i32_1 = arith.constant 0 : i32
    return %arg0, %c0_i32, %c0_i32_0 : i32, i32, i32
  }
  func.func @transform_1(%arg0: i32) -> (i32, i32) {
    %c0_i32 = arith.constant 0 : i32
    %c0_i32_0 = arith.constant 0 : i32
    %c0_i32_1 = arith.constant 0 : i32
    return %c0_i32, %c0_i32_0 : i32, i32
  }
  func.func @transform_2(%arg0: i32) -> (i32, i32) {
    %c0_i32 = arith.constant 0 : i32
    %c0_i32_0 = arith.constant 0 : i32
    %c0_i32_1 = arith.constant 0 : i32
    return %c0_i32, %c0_i32_0 : i32, i32
  }
  func.func @transform_3(%arg0: i32) -> (i32, i32) {
    %c0_i32 = arith.constant 0 : i32
    %c0_i32_0 = arith.constant 0 : i32
    %c0_i32_1 = arith.constant 0 : i32
    return %c0_i32, %c0_i32_0 : i32, i32
  }
  func.func @transform_4(%arg0: i32) -> (i32, i32) {
    %c0_i32 = arith.constant 0 : i32
    %c0_i32_0 = arith.constant 0 : i32
    %c0_i32_1 = arith.constant 0 : i32
    return %c0_i32, %c0_i32_0 : i32, i32
  }
  func.func @transform_5(%arg0: i32) -> (i32, i32, i32) {
    %c0_i32 = arith.constant 0 : i32
    %c0_i32_0 = arith.constant 0 : i32
    %c0_i32_1 = arith.constant 0 : i32
    return %arg0, %c0_i32, %c0_i32_0 : i32, i32, i32
  }
}

</mosaic_0001>

<llo_original>
// kernel: tpu_custom_call.1
$region0: #{tpu_custom_call.1}
  #allocation0 [shape = 'u32[]', space=smem, size = 0x4, offset = 0x4, fixed_abs, tag = 'smem constant byte address 0x4 - core index']
  #allocation1 [shape = 'u32[144,128]{1,0:T(1,128)}', space=vmem, size = 0x12000, scoped, tag = 'internal scratch']
  #allocation2 [shape = 'f32[2,2,32]{2,1,0:T(2,128)}', space=vmem, size = 0x800, scoped, tag = 'scratch operand']
  #allocation3 [shape = 'f32[2,2,32]{2,1,0:T(2,128)}', space=vmem, size = 0x800, scoped, tag = 'scratch operand']
  %s0 = inlined_call_operand.hbm [shape: bf16[8,2,128], index: 0, kind: input, shape index: {}]
  %s1 = inlined_call_operand.hbm [shape: bf16[32,128], index: 1, kind: input, shape index: {}]
  %s2 = inlined_call_operand.hbm [shape: bf16[32,128], index: 2, kind: input, shape index: {}]
  %s3 = inlined_call_operand.hbm [shape: bf16[32,128], index: 3, kind: input, shape index: {}]
  %s4 = inlined_call_operand.vmem [shape: f32[1,128], index: 4, kind: input, shape index: {}]
  %s5 = inlined_call_operand.hbm [shape: f32[8,2,32], index: 5, kind: output, shape index: {}]
  %s6 = sld [smem:[#allocation0]]
  $region57: #{tpu_custom_call.1} parent=0
    _
  %s8 = ssub.s32 1, %s6
  %s9 = scalar_select 0, %s8, %s6
  $region1: #{tpu_custom_call.1} parent=0
    #allocation4 [shape = 'u8[4096]{0}', space=vmem, size = 0x1000, scoped, tag = 'input window, operand 0, single buffered']
    #allocation5 [shape = 's32[1]{0}', space=sflag, size = 0x4, scoped, tag = 'scoped memory for tpu_custom_call.1']
    #allocation6 [shape = 's32[1]{0}', space=sflag, size = 0x4, scoped, tag = 'scoped memory for tpu_custom_call.1']
    #allocation7 [shape = 'u8[8192]{0}', space=vmem, size = 0x2000, scoped, tag = 'input window, operand 1, single buffered']
    #allocation8 [shape = 's32[1]{0}', space=sflag, size = 0x4, scoped, tag = 'scoped memory for tpu_custom_call.1']
    #allocation9 [shape = 'u8[8192]{0}', space=vmem, size = 0x2000, scoped, tag = 'input window, operand 2, single buffered']
    #allocation10 [shape = 'u8[8192]{0}', space=vmem, size = 0x2000, scoped, tag = 'input window, operand 3, single buffered']
    #allocation11 [shape = 's32[1]{0}', space=sflag, size = 0x4, scoped, tag = 'scoped memory for tpu_custom_call.1']
    #allocation12 [shape = 'u8[8192]{0}', space=vmem, size = 0x2000, scoped, tag = 'output window, operand 0, single buffered']
    %10 = vsyncpa [#allocation5], 0
    %11 = vsyncpa [#allocation8], 0
    %12 = vsyncpa [#allocation11], 0
    %13 = vsyncpa [#allocation6], 0
    // Predicated region
    $region2: #{tpu_custom_call.1} parent=1 // pred_check
      _
    $region3: #{tpu_custom_call.1} parent=1 // pred_check_branch
      %15 = sbr.rel (0) target = $region5
    $region4: #{tpu_custom_call.1} parent=1 // pred_region
      %s17 = ssub.s32 128, 128
      %18 = vsyncadd [#allocation5], %s17
      %s19 = sshll.u32 [#allocation4], 4
      %s20 = int_to_ptr.vmem [resolvable:$true] %s19
      %25 = dma.hbm_to_vmem [thread:$0]  %s0, 128, %s20, [#allocation5], 16, 16, 1
    $region5: #{tpu_custom_call.1} parent=1 // pred_fallthru
      _
    // Predicated region
    $region6: #{tpu_custom_call.1} parent=1 // pred_check
      _
    $region7: #{tpu_custom_call.1} parent=1 // pred_check_branch
      %27 = sbr.rel (0) target = $region9
    $region8: #{tpu_custom_call.1} parent=1 // pred_region
      %s29 = ssub.s32 256, 256
      %30 = vsyncadd [#allocation8], %s29
      %s31 = sshll.u32 [#allocation7], 4
      %s32 = int_to_ptr.vmem [resolvable:$true] %s31
      %37 = dma.hbm_to_vmem [thread:$0]  %s1, 256, %s32, [#allocation8], 64, 64, 4
    $region9: #{tpu_custom_call.1} parent=1 // pred_fallthru
      _
    // Predicated region
    $region10: #{tpu_custom_call.1} parent=1 // pred_check
      _
    $region11: #{tpu_custom_call.1} parent=1 // pred_check_branch
      %39 = sbr.rel (0) target = $region13
    $region12: #{tpu_custom_call.1} parent=1 // pred_region
      %s41 = ssub.s32 256, 256
      %42 = vsyncadd [#allocation8], %s41
      %s43 = sshll.u32 [#allocation9], 4
      %s44 = int_to_ptr.vmem [resolvable:$true] %s43
      %49 = dma.hbm_to_vmem [thread:$0]  %s2, 256, %s44, [#allocation8], 64, 64, 4
    $region13: #{tpu_custom_call.1} parent=1 // pred_fallthru
      _
    // Predicated region
    $region14: #{tpu_custom_call.1} parent=1 // pred_check
      _
    $region15: #{tpu_custom_call.1} parent=1 // pred_check_branch
      %51 = sbr.rel (0) target = $region17
    $region16: #{tpu_custom_call.1} parent=1 // pred_region
      %s53 = ssub.s32 256, 256
      %54 = vsyncadd [#allocation11], %s53
      %s55 = sshll.u32 [#allocation10], 4
      %s56 = int_to_ptr.vmem [resolvable:$true] %s55
      %61 = dma.hbm_to_vmem [thread:$0]  %s3, 256, %s56, [#allocation11], 64, 64, 4
    $region17: #{tpu_custom_call.1} parent=1 // pred_fallthru
      _
    // Predicated region
    $region18: #{tpu_custom_call.1} parent=1 // pred_check
      _
    $region19: #{tpu_custom_call.1} parent=1 // pred_check_branch
      %63 = sbr.rel (0) target = $region21
    $region20: #{tpu_custom_call.1} parent=1 // pred_region
      _
    $region21: #{tpu_custom_call.1} parent=1 // pred_fallthru
      _
    // Predicated region
    $region22: #{tpu_custom_call.1} parent=1 // pred_check
      _
    $region23: #{tpu_custom_call.1} parent=1 // pred_check_branch
      %65 = sbr.rel (0) target = $region25
    $region24: #{tpu_custom_call.1} parent=1 // pred_region
      %66 = dma.done [#allocation5], 128
    $region25: #{tpu_custom_call.1} parent=1 // pred_fallthru
      _
    // Predicated region
    $region26: #{tpu_custom_call.1} parent=1 // pred_check
      _
    $region27: #{tpu_custom_call.1} parent=1 // pred_check_branch
      %68 = sbr.rel (0) target = $region29
    $region28: #{tpu_custom_call.1} parent=1 // pred_region
      %69 = dma.done [#allocation8], 256
    $region29: #{tpu_custom_call.1} parent=1 // pred_fallthru
      _
    // Predicated region
    $region30: #{tpu_custom_call.1} parent=1 // pred_check
      _
    $region31: #{tpu_custom_call.1} parent=1 // pred_check_branch
      %71 = sbr.rel (0) target = $region33
    $region32: #{tpu_custom_call.1} parent=1 // pred_region
      %72 = dma.done [#allocation8], 256
    $region33: #{tpu_custom_call.1} parent=1 // pred_fallthru
      _
    // Predicated region
    $region34: #{tpu_custom_call.1} parent=1 // pred_check
      _
    $region35: #{tpu_custom_call.1} parent=1 // pred_check_branch
      %74 = sbr.rel (0) target = $region37
    $region36: #{tpu_custom_call.1} parent=1 // pred_region
      %75 = dma.done [#allocation11], 256
    $region37: #{tpu_custom_call.1} parent=1 // pred_fallthru
      _
    %p77 = scmp.eq.s32.totalorder 0, 0
    // Predicated region
    $region38: #{tpu_custom_call.1} parent=1 // pred_check
      %p78 = pneg %p77
    $region39: #{tpu_custom_call.1} parent=1 // pred_check_branch
      %80 = sbr.rel (%p78) target = $region41
    $region40: #{tpu_custom_call.1} parent=1 // pred_region
      %vm81 = vcmask 254976
      %82 = vst.msk [vmem:[#allocation2] sm:$0x3] %vm81, 0.0
      %83 = vst.msk [vmem:[#allocation2 + $0x2] sm:$0x3] %vm81, 0.0
      %84 = vst.msk [vmem:[#allocation3] sm:$0x3] %vm81, 0.0
      %85 = vst.msk [vmem:[#allocation3 + $0x2] sm:$0x3] %vm81, 0.0
    $region41: #{tpu_custom_call.1} parent=1 // pred_fallthru
      _
    %v86 = vld [vmem:[#allocation2] sm:$0x3]
    %s87 = scalar_lea.vmem [#allocation2], 2
    %v88 = vld [vmem:[%s87] sm:$0x3]
    %v89 = vld [vmem:[#allocation3] sm:$0x3]
    %s90 = scalar_lea.vmem [#allocation3], 2
    %v91 = vld [vmem:[%s90] sm:$0x3]
    loop: start=0, step=1, limit=2
    $region42: #{tpu_custom_call.1} parent=1 // loop_pre_header
      _
    $region43: #{tpu_custom_call.1} parent=1 // loop_header
      %s93 = sphi 0, %s97
      %p94 = scmp.ge.s32.totalorder %s93, 2
      %v98 = vphi %v86, %v1129
      %v99 = vphi %v88, %v1115
      %v100 = vphi %v89, %v1140
      %v101 = vphi %v91, %v1144
    $region44: #{tpu_custom_call.1} parent=1 // loop_header_branch
      %96 = sbr.rel (%p94) target = $region48
    $region45: #{tpu_custom_call.1} parent=1 // loop_body
      %s102 = smul.u32 %s93, 4
      %s103 = scalar_lea.vmem [#allocation4], %s102
      %v104 = vld [vmem:[%s103] sm:$0x1]
      %v105 = vunpack.c.l.bf16 %v104
      %v106 = vpack.c.bf16 %v98, %v98
      %v107 = vld [vmem:[#allocation7] sm:$0xf]
      %v108 = vld [vmem:[#allocation7 + $0x4] sm:$0xf]
      %v109 = vld [vmem:[#allocation7 + $0x8] sm:$0xf]
      %v110 = vld [vmem:[#allocation7 + $0xc] sm:$0xf]
      %v115 = vunpack.c.l.b16 %v107
      %v116 = vunpack.c.l.b16 %v108
      %v117 = vunpack.c.l.b16 %v109
      %v118 = vunpack.c.l.b16 %v110
      %v119 = vpack.c.b16 %v116, %v115
      %v120 = vpack.c.b16 %v118, %v117
      %vm123 = vcmask 261120
      %v125 = vsel %vm123, %v106, 0
      %127 = vmatprep.subr.bf16.mxu0 0
      %128 = vmatpush1.bf16.msra.mxu0 %v119
      %129 = vmatprep.subr.bf16.mxu0 0
      %130 = vmatpush1.bf16.msra.mxu0 %v120
      %131 = vmatprep.subr.bf16.mxu0 0
      %132 = vmatpush1.bf16.msra.mxu0 0
      %133 = vmatprep.subr.bf16.mxu0 0
      %134 = vmatpush1.bf16.msra.mxu0 0
      %135 = vmatprep.subr.bf16.mxu0 0
      %136 = vmatpush1.bf16.msra.mxu0 0
      %137 = vmatprep.subr.bf16.mxu0 0
      %138 = vmatpush1.bf16.msra.mxu0 0
      %139 = vmatprep.subr.bf16.mxu0 0
      %140 = vmatpush1.bf16.msra.mxu0 0
      %141 = vmatprep.subr.bf16.mxu0 0
      %142 = vmatpush1.bf16.msra.mxu0 0
      %143 = vmatprep.subr.bf16.mxu0 0
      %144 = vmatpush1.bf16.msra.mxu0 0
      %145 = vmatprep.subr.bf16.mxu0 0
      %146 = vmatpush1.bf16.msra.mxu0 0
      %147 = vmatprep.subr.bf16.mxu0 0
      %148 = vmatpush1.bf16.msra.mxu0 0
      %149 = vmatprep.subr.bf16.mxu0 0
      %150 = vmatpush1.bf16.msra.mxu0 0
      %151 = vmatprep.subr.bf16.mxu0 0
      %152 = vmatpush1.bf16.msra.mxu0 0
      %153 = vmatprep.subr.bf16.mxu0 0
      %154 = vmatpush1.bf16.msra.mxu0 0
      %155 = vmatprep.subr.bf16.mxu0 0
      %156 = vmatpush1.bf16.msra.mxu0 0
      %157 = vmatprep.subr.bf16.mxu0 0
      %158 = vmatpush1.bf16.msra.mxu0 0
      %159 = vmatprep.mubr.bf16.mxu0 0
      %160 = vmatmul.mubr.bf16.gmra.mrb[0].mxu0 %v125
      %v161 = vpop.f32.mrb[0].mxu0
      %v162 = vadd.f32 0.0, %v161
      %v163 = vpop.f32.mrb[0].mxu0
      %v164 = vpop.f32.mrb[0].mxu0
      %v165 = vpop.f32.mrb[0].mxu0
      %166 = vdwg.mxu0
      %v167 = vadd.f32 %v105, %v162
      %v168 = vxor.u32 %v167, 2147483648
      %v169 = vmul.f32 %v168, 1.442695
      %v170 = vpow.pop %v169
      %v171 = vadd.f32 %v170, 1.0
      %v172 = vrcp.pop %v171
      %v173 = vmul.f32 1.0, %v172
      %v174 = vtanh.pop %v167
      %v177 = vunpack.c.l.s4 1983009808
      %v178 = vunpack.c.0.s8 %v177
      %v179 = vlaneseq
      %v180 = vshrl.u32 %v179, 7
      %v181 = vsub.s32 %v178, %v180
      %v182 = vrot.slane %v100, %v181
      %183 = vrot.lane.b32.xlu0 %v182, 32
      %v184 = vpop.permute.xlu0 %183
      %v186 = vmul.f32 %v173, %v184
      %188 = vrot.lane.b32.xlu0 %v174, 32
      %v189 = vpop.permute.xlu0 %188
      %v191 = vmul.f32 %v173, %v189
      %193 = vrot.lane.b32.xlu0 %v191, 32
      %v194 = vpop.permute.xlu0 %193
      %v196 = vadd.f32 %v186, %v194
      %v197 = vtanh.pop %v196
      %199 = vrot.lane.b32.xlu0 %v197, 32
      %v200 = vpop.permute.xlu0 %199
      %v202 = vmul.f32 %v173, %v200
      %v203 = vpack.c.bf16 %v202, %v202
      %v204 = vld [vmem:[#allocation9] sm:$0xf]
      %v205 = vld [vmem:[#allocation9 + $0x4] sm:$0xf]
      %v206 = vld [vmem:[#allocation9 + $0x8] sm:$0xf]
      %v207 = vld [vmem:[#allocation9 + $0xc] sm:$0xf]
      %v208 = vpack.c.bf16 %v99, %v99
      %v209 = vld [vmem:[#allocation10] sm:$0xf]
      %v210 = vld [vmem:[#allocation10 + $0x4] sm:$0xf]
      %v211 = vld [vmem:[#allocation10 + $0x8] sm:$0xf]
      %v212 = vld [vmem:[#allocation10 + $0xc] sm:$0xf]
      %v217 = vunpack.c.l.b16 %v209
      %v218 = vunpack.c.l.b16 %v210
      %v219 = vunpack.c.l.b16 %v211
      %v220 = vunpack.c.l.b16 %v212
      %v221 = vpack.c.b16 %v218, %v217
      %v222 = vpack.c.b16 %v220, %v219
      %v226 = vsel %vm123, %v208, 0
      %228 = vmatprep.subr.bf16.mxu0 0
      %229 = vmatpush1.bf16.msra.mxu0 %v221
      %230 = vmatprep.subr.bf16.mxu0 0
      %231 = vmatpush1.bf16.msra.mxu0 %v222
      %232 = vmatprep.subr.bf16.mxu0 0
      %233 = vmatpush1.bf16.msra.mxu0 0
      %234 = vmatprep.subr.bf16.mxu0 0
      %235 = vmatpush1.bf16.msra.mxu0 0
      %236 = vmatprep.subr.bf16.mxu0 0
      %237 = vmatpush1.bf16.msra.mxu0 0
      %238 = vmatprep.subr.bf16.mxu0 0
      %239 = vmatpush1.bf16.msra.mxu0 0
      %240 = vmatprep.subr.bf16.mxu0 0
      %241 = vmatpush1.bf16.msra.mxu0 0
      %242 = vmatprep.subr.bf16.mxu0 0
      %243 = vmatpush1.bf16.msra.mxu0 0
      %244 = vmatprep.subr.bf16.mxu0 0
      %245 = vmatpush1.bf16.msra.mxu0 0
      %246 = vmatprep.subr.bf16.mxu0 0
      %247 = vmatpush1.bf16.msra.mxu0 0
      %248 = vmatprep.subr.bf16.mxu0 0
      %249 = vmatpush1.bf16.msra.mxu0 0
      %250 = vmatprep.subr.bf16.mxu0 0
      %251 = vmatpush1.bf16.msra.mxu0 0
      %252 = vmatprep.subr.bf16.mxu0 0
      %253 = vmatpush1.bf16.msra.mxu0 0
      %254 = vmatprep.subr.bf16.mxu0 0
      %255 = vmatpush1.bf16.msra.mxu0 0
      %256 = vmatprep.subr.bf16.mxu0 0
      %257 = vmatpush1.bf16.msra.mxu0 0
      %258 = vmatprep.subr.bf16.mxu0 0
      %259 = vmatpush1.bf16.msra.mxu0 0
      %260 = vmatprep.mubr.bf16.mxu0 0
      %261 = vmatmul.mubr.bf16.gmra.mrb[0].mxu0 %v226
      %v262 = vpop.f32.mrb[0].mxu0
      %v263 = vadd.f32 0.0, %v262
      %v264 = vpop.f32.mrb[0].mxu0
      %v265 = vpop.f32.mrb[0].mxu0
      %v266 = vpop.f32.mrb[0].mxu0
      %267 = vdwg.mxu0
      %269 = vrot.lane.b32.xlu0 %v203, 64
      %v270 = vpop.permute.xlu0 %269
      %v275 = vunpack.c.l.b16 %v204
      %v276 = vunpack.c.l.b16 %v205
      %v277 = vunpack.c.l.b16 %v206
      %v278 = vunpack.c.l.b16 %v207
      %v279 = vpack.c.b16 %v276, %v275
      %v280 = vpack.c.b16 %v278, %v277
      %v284 = vsel %vm123, %v270, 0
      %286 = vmatprep.subr.bf16.mxu0 0
      %287 = vmatpush1.bf16.msra.mxu0 %v279
      %288 = vmatprep.subr.bf16.mxu0 0
      %289 = vmatpush1.bf16.msra.mxu0 %v280
      %290 = vmatprep.subr.bf16.mxu0 0
      %291 = vmatpush1.bf16.msra.mxu0 0
      %292 = vmatprep.subr.bf16.mxu0 0
      %293 = vmatpush1.bf16.msra.mxu0 0
      %294 = vmatprep.subr.bf16.mxu0 0
      %295 = vmatpush1.bf16.msra.mxu0 0
      %296 = vmatprep.subr.bf16.mxu0 0
      %297 = vmatpush1.bf16.msra.mxu0 0
      %298 = vmatprep.subr.bf16.mxu0 0
      %299 = vmatpush1.bf16.msra.mxu0 0
      %300 = vmatprep.subr.bf16.mxu0 0
      %301 = vmatpush1.bf16.msra.mxu0 0
      %302 = vmatprep.subr.bf16.mxu0 0
      %303 = vmatpush1.bf16.msra.mxu0 0
      %304 = vmatprep.subr.bf16.mxu0 0
      %305 = vmatpush1.bf16.msra.mxu0 0
      %306 = vmatprep.subr.bf16.mxu0 0
      %307 = vmatpush1.bf16.msra.mxu0 0
      %308 = vmatprep.subr.bf16.mxu0 0
      %309 = vmatpush1.bf16.msra.mxu0 0
      %310 = vmatprep.subr.bf16.mxu0 0
      %311 = vmatpush1.bf16.msra.mxu0 0
      %312 = vmatprep.subr.bf16.mxu0 0
      %313 = vmatpush1.bf16.msra.mxu0 0
      %314 = vmatprep.subr.bf16.mxu0 0
      %315 = vmatpush1.bf16.msra.mxu0 0
      %316 = vmatprep.subr.bf16.mxu0 0
      %317 = vmatpush1.bf16.msra.mxu0 0
      %318 = vmatprep.mubr.bf16.mxu0 0
      %319 = vmatmul.mubr.bf16.gmra.mrb[0].mxu0 %v284
      %v320 = vpop.f32.mrb[0].mxu0
      %v321 = vadd.f32 %v263, %v320
      %v322 = vpop.f32.mrb[0].mxu0
      %v323 = vpop.f32.mrb[0].mxu0
      %v324 = vpop.f32.mrb[0].mxu0
      %325 = vdwg.mxu0
      %v326 = vld [vmem:[%s4] sm:$0x1]
      %v328 = vlaneseq
      %v329 = vshrl.u32 %v328, 7
      %v330 = vsub.s32 0, %v329
      %v331 = vrot.slane %v326, %v330
      %v333 = vadd.f32 %v321, %v331
      %v334 = vxor.u32 %v333, 2147483648
      %v335 = vmul.f32 %v334, 1.442695
      %v336 = vpow.pop %v335
      %v337 = vadd.f32 %v336, 1.0
      %v338 = vrcp.pop %v337
      %v339 = vmul.f32 1.0, %v338
      %v340 = vtanh.pop %v333
      %342 = vrot.lane.b32.xlu0 %v101, 32
      %v343 = vpop.permute.xlu0 %342
      %v345 = vmul.f32 %v339, %v343
      %347 = vrot.lane.b32.xlu0 %v340, 32
      %v348 = vpop.permute.xlu0 %347
      %v350 = vmul.f32 %v339, %v348
      %352 = vrot.lane.b32.xlu0 %v350, 32
      %v353 = vpop.permute.xlu0 %352
      %v355 = vadd.f32 %v345, %v353
      %v356 = vtanh.pop %v355
      %358 = vrot.lane.b32.xlu0 %v356, 32
      %v359 = vpop.permute.xlu0 %358
      %v361 = vmul.f32 %v339, %v359
      %363 = vrot.lane.b32.xlu0 %v361, 64
      %v364 = vpop.permute.xlu0 %363
      %s366 = smul.u32 %s102, 2
      %s367 = scalar_lea.vmem [#allocation12], %s366
      %vm368 = vcmask 254976
      %369 = vst.msk [vmem:[%s367] sm:$0x3] %vm368, %v364
      %s370 = sadd.s32 %s102, 1
      %s371 = scalar_lea.vmem [#allocation4], %s370
      %v372 = vld [vmem:[%s371] sm:$0x1]
      %v373 = vunpack.c.l.bf16 %v372
      %v374 = vld [vmem:[#allocation7] sm:$0xf]
      %v375 = vld [vmem:[#allocation7 + $0x4] sm:$0xf]
      %v376 = vld [vmem:[#allocation7 + $0x8] sm:$0xf]
      %v377 = vld [vmem:[#allocation7 + $0xc] sm:$0xf]
      %v382 = vunpack.c.l.b16 %v374
      %v383 = vunpack.c.l.b16 %v375
      %v384 = vunpack.c.l.b16 %v376
      %v385 = vunpack.c.l.b16 %v377
      %v386 = vpack.c.b16 %v383, %v382
      %v387 = vpack.c.b16 %v385, %v384
      %390 = vmatprep.subr.bf16.mxu0 0
      %391 = vmatpush1.bf16.msra.mxu0 %v386
      %392 = vmatprep.subr.bf16.mxu0 0
      %393 = vmatpush1.bf16.msra.mxu0 %v387
      %394 = vmatprep.subr.bf16.mxu0 0
      %395 = vmatpush1.bf16.msra.mxu0 0
      %396 = vmatprep.subr.bf16.mxu0 0
      %397 = vmatpush1.bf16.msra.mxu0 0
      %398 = vmatprep.subr.bf16.mxu0 0
      %399 = vmatpush1.bf16.msra.mxu0 0
      %400 = vmatprep.subr.bf16.mxu0 0
      %401 = vmatpush1.bf16.msra.mxu0 0
      %402 = vmatprep.subr.bf16.mxu0 0
      %403 = vmatpush1.bf16.msra.mxu0 0
      %404 = vmatprep.subr.bf16.mxu0 0
      %405 = vmatpush1.bf16.msra.mxu0 0
      %406 = vmatprep.subr.bf16.mxu0 0
      %407 = vmatpush1.bf16.msra.mxu0 0
      %408 = vmatprep.subr.bf16.mxu0 0
      %409 = vmatpush1.bf16.msra.mxu0 0
      %410 = vmatprep.subr.bf16.mxu0 0
      %411 = vmatpush1.bf16.msra.mxu0 0
      %412 = vmatprep.subr.bf16.mxu0 0
      %413 = vmatpush1.bf16.msra.mxu0 0
      %414 = vmatprep.subr.bf16.mxu0 0
      %415 = vmatpush1.bf16.msra.mxu0 0
      %416 = vmatprep.subr.bf16.mxu0 0
      %417 = vmatpush1.bf16.msra.mxu0 0
      %418 = vmatprep.subr.bf16.mxu0 0
      %419 = vmatpush1.bf16.msra.mxu0 0
      %420 = vmatprep.subr.bf16.mxu0 0
      %421 = vmatpush1.bf16.msra.mxu0 0
      %422 = vmatprep.mubr.bf16.mxu0 0
      %423 = vmatmul.mubr.bf16.gmra.mrb[0].mxu0 %v284
      %v424 = vpop.f32.mrb[0].mxu0
      %v425 = vadd.f32 0.0, %v424
      %v426 = vpop.f32.mrb[0].mxu0
      %v427 = vpop.f32.mrb[0].mxu0
      %v428 = vpop.f32.mrb[0].mxu0
      %429 = vdwg.mxu0
      %v430 = vadd.f32 %v373, %v425
      %v431 = vxor.u32 %v430, 2147483648
      %v432 = vmul.f32 %v431, 1.442695
      %v433 = vpow.pop %v432
      %v434 = vadd.f32 %v433, 1.0
      %v435 = vrcp.pop %v434
      %v436 = vmul.f32 1.0, %v435
      %v437 = vtanh.pop %v430
      %v438 = vmul.f32 %v436, %v196
      %440 = vrot.lane.b32.xlu0 %v437, 32
      %v441 = vpop.permute.xlu0 %440
      %v443 = vmul.f32 %v436, %v441
      %445 = vrot.lane.b32.xlu0 %v443, 32
      %v446 = vpop.permute.xlu0 %445
      %v448 = vadd.f32 %v438, %v446
      %v449 = vtanh.pop %v448
      %451 = vrot.lane.b32.xlu0 %v449, 32
      %v452 = vpop.permute.xlu0 %451
      %v454 = vmul.f32 %v436, %v452
      %v455 = vpack.c.bf16 %v454, %v454
      %v456 = vld [vmem:[#allocation9] sm:$0xf]
      %v457 = vld [vmem:[#allocation9 + $0x4] sm:$0xf]
      %v458 = vld [vmem:[#allocation9 + $0x8] sm:$0xf]
      %v459 = vld [vmem:[#allocation9 + $0xc] sm:$0xf]
      %v460 = vpack.c.bf16 %v361, %v361
      %v461 = vld [vmem:[#allocation10] sm:$0xf]
      %v462 = vld [vmem:[#allocation10 + $0x4] sm:$0xf]
      %v463 = vld [vmem:[#allocation10 + $0x8] sm:$0xf]
      %v464 = vld [vmem:[#allocation10 + $0xc] sm:$0xf]
      %466 = vrot.lane.b32.xlu0 %v460, 64
      %v467 = vpop.permute.xlu0 %466
      %v472 = vunpack.c.l.b16 %v461
      %v473 = vunpack.c.l.b16 %v462
      %v474 = vunpack.c.l.b16 %v463
      %v475 = vunpack.c.l.b16 %v464
      %v476 = vpack.c.b16 %v473, %v472
      %v477 = vpack.c.b16 %v475, %v474
      %v481 = vsel %vm123, %v467, 0
      %483 = vmatprep.subr.bf16.mxu0 0
      %484 = vmatpush1.bf16.msra.mxu0 %v476
      %485 = vmatprep.subr.bf16.mxu0 0
      %486 = vmatpush1.bf16.msra.mxu0 %v477
      %487 = vmatprep.subr.bf16.mxu0 0
      %488 = vmatpush1.bf16.msra.mxu0 0
      %489 = vmatprep.subr.bf16.mxu0 0
      %490 = vmatpush1.bf16.msra.mxu0 0
      %491 = vmatprep.subr.bf16.mxu0 0
      %492 = vmatpush1.bf16.msra.mxu0 0
      %493 = vmatprep.subr.bf16.mxu0 0
      %494 = vmatpush1.bf16.msra.mxu0 0
      %495 = vmatprep.subr.bf16.mxu0 0
      %496 = vmatpush1.bf16.msra.mxu0 0
      %497 = vmatprep.subr.bf16.mxu0 0
      %498 = vmatpush1.bf16.msra.mxu0 0
      %499 = vmatprep.subr.bf16.mxu0 0
      %500 = vmatpush1.bf16.msra.mxu0 0
      %501 = vmatprep.subr.bf16.mxu0 0
      %502 = vmatpush1.bf16.msra.mxu0 0
      %503 = vmatprep.subr.bf16.mxu0 0
      %504 = vmatpush1.bf16.msra.mxu0 0
      %505 = vmatprep.subr.bf16.mxu0 0
      %506 = vmatpush1.bf16.msra.mxu0 0
      %507 = vmatprep.subr.bf16.mxu0 0
      %508 = vmatpush1.bf16.msra.mxu0 0
      %509 = vmatprep.subr.bf16.mxu0 0
      %510 = vmatpush1.bf16.msra.mxu0 0
      %511 = vmatprep.subr.bf16.mxu0 0
      %512 = vmatpush1.bf16.msra.mxu0 0
      %513 = vmatprep.subr.bf16.mxu0 0
      %514 = vmatpush1.bf16.msra.mxu0 0
      %515 = vmatprep.mubr.bf16.mxu0 0
      %516 = vmatmul.mubr.bf16.gmra.mrb[0].mxu0 %v481
      %v517 = vpop.f32.mrb[0].mxu0
      %v518 = vadd.f32 0.0, %v517
      %v519 = vpop.f32.mrb[0].mxu0
      %v520 = vpop.f32.mrb[0].mxu0
      %v521 = vpop.f32.mrb[0].mxu0
      %522 = vdwg.mxu0
      %524 = vrot.lane.b32.xlu0 %v455, 64
      %v525 = vpop.permute.xlu0 %524
      %v530 = vunpack.c.l.b16 %v456
      %v531 = vunpack.c.l.b16 %v457
      %v532 = vunpack.c.l.b16 %v458
      %v533 = vunpack.c.l.b16 %v459
      %v534 = vpack.c.b16 %v531, %v530
      %v535 = vpack.c.b16 %v533, %v532
      %v539 = vsel %vm123, %v525, 0
      %541 = vmatprep.subr.bf16.mxu0 0
      %542 = vmatpush1.bf16.msra.mxu0 %v534
      %543 = vmatprep.subr.bf16.mxu0 0
      %544 = vmatpush1.bf16.msra.mxu0 %v535
      %545 = vmatprep.subr.bf16.mxu0 0
      %546 = vmatpush1.bf16.msra.mxu0 0
      %547 = vmatprep.subr.bf16.mxu0 0
      %548 = vmatpush1.bf16.msra.mxu0 0
      %549 = vmatprep.subr.bf16.mxu0 0
      %550 = vmatpush1.bf16.msra.mxu0 0
      %551 = vmatprep.subr.bf16.mxu0 0
      %552 = vmatpush1.bf16.msra.mxu0 0
      %553 = vmatprep.subr.bf16.mxu0 0
      %554 = vmatpush1.bf16.msra.mxu0 0
      %555 = vmatprep.subr.bf16.mxu0 0
      %556 = vmatpush1.bf16.msra.mxu0 0
      %557 = vmatprep.subr.bf16.mxu0 0
      %558 = vmatpush1.bf16.msra.mxu0 0
      %559 = vmatprep.subr.bf16.mxu0 0
      %560 = vmatpush1.bf16.msra.mxu0 0
      %561 = vmatprep.subr.bf16.mxu0 0
      %562 = vmatpush1.bf16.msra.mxu0 0
      %563 = vmatprep.subr.bf16.mxu0 0
      %564 = vmatpush1.bf16.msra.mxu0 0
      %565 = vmatprep.subr.bf16.mxu0 0
      %566 = vmatpush1.bf16.msra.mxu0 0
      %567 = vmatprep.subr.bf16.mxu0 0
      %568 = vmatpush1.bf16.msra.mxu0 0
      %569 = vmatprep.subr.bf16.mxu0 0
      %570 = vmatpush1.bf16.msra.mxu0 0
      %571 = vmatprep.subr.bf16.mxu0 0
      %572 = vmatpush1.bf16.msra.mxu0 0
      %573 = vmatprep.mubr.bf16.mxu0 0
      %574 = vmatmul.mubr.bf16.gmra.mrb[0].mxu0 %v539
      %v575 = vpop.f32.mrb[0].mxu0
      %v576 = vadd.f32 %v518, %v575
      %v577 = vpop.f32.mrb[0].mxu0
      %v578 = vpop.f32.mrb[0].mxu0
      %v579 = vpop.f32.mrb[0].mxu0
      %580 = vdwg.mxu0
      %v581 = vld [vmem:[%s4] sm:$0x1]
      %v583 = vlaneseq
      %v584 = vshrl.u32 %v583, 7
      %v585 = vsub.s32 0, %v584
      %v586 = vrot.slane %v581, %v585
      %v588 = vadd.f32 %v576, %v586
      %v589 = vxor.u32 %v588, 2147483648
      %v590 = vmul.f32 %v589, 1.442695
      %v591 = vpow.pop %v590
      %v592 = vadd.f32 %v591, 1.0
      %v593 = vrcp.pop %v592
      %v594 = vmul.f32 1.0, %v593
      %v595 = vtanh.pop %v588
      %v596 = vmul.f32 %v594, %v355
      %598 = vrot.lane.b32.xlu0 %v595, 32
      %v599 = vpop.permute.xlu0 %598
      %v601 = vmul.f32 %v594, %v599
      %603 = vrot.lane.b32.xlu0 %v601, 32
      %v604 = vpop.permute.xlu0 %603
      %v606 = vadd.f32 %v596, %v604
      %v607 = vtanh.pop %v606
      %609 = vrot.lane.b32.xlu0 %v607, 32
      %v610 = vpop.permute.xlu0 %609
      %v612 = vmul.f32 %v594, %v610
      %614 = vrot.lane.b32.xlu0 %v612, 64
      %v615 = vpop.permute.xlu0 %614
      %s617 = smul.u32 %s370, 2
      %s618 = scalar_lea.vmem [#allocation12], %s617
      %619 = vst.msk [vmem:[%s618] sm:$0x3] %vm368, %v615
      %s620 = sadd.s32 %s102, 2
      %s621 = scalar_lea.vmem [#allocation4], %s620
      %v622 = vld [vmem:[%s621] sm:$0x1]
      %v623 = vunpack.c.l.bf16 %v622
      %v624 = vld [vmem:[#allocation7] sm:$0xf]
      %v625 = vld [vmem:[#allocation7 + $0x4] sm:$0xf]
      %v626 = vld [vmem:[#allocation7 + $0x8] sm:$0xf]
      %v627 = vld [vmem:[#allocation7 + $0xc] sm:$0xf]
      %v632 = vunpack.c.l.b16 %v624
      %v633 = vunpack.c.l.b16 %v625
      %v634 = vunpack.c.l.b16 %v626
      %v635 = vunpack.c.l.b16 %v627
      %v636 = vpack.c.b16 %v633, %v632
      %v637 = vpack.c.b16 %v635, %v634
      %640 = vmatprep.subr.bf16.mxu0 0
      %641 = vmatpush1.bf16.msra.mxu0 %v636
      %642 = vmatprep.subr.bf16.mxu0 0
      %643 = vmatpush1.bf16.msra.mxu0 %v637
      %644 = vmatprep.subr.bf16.mxu0 0
      %645 = vmatpush1.bf16.msra.mxu0 0
      %646 = vmatprep.subr.bf16.mxu0 0
      %647 = vmatpush1.bf16.msra.mxu0 0
      %648 = vmatprep.subr.bf16.mxu0 0
      %649 = vmatpush1.bf16.msra.mxu0 0
      %650 = vmatprep.subr.bf16.mxu0 0
      %651 = vmatpush1.bf16.msra.mxu0 0
      %652 = vmatprep.subr.bf16.mxu0 0
      %653 = vmatpush1.bf16.msra.mxu0 0
      %654 = vmatprep.subr.bf16.mxu0 0
      %655 = vmatpush1.bf16.msra.mxu0 0
      %656 = vmatprep.subr.bf16.mxu0 0
      %657 = vmatpush1.bf16.msra.mxu0 0
      %658 = vmatprep.subr.bf16.mxu0 0
      %659 = vmatpush1.bf16.msra.mxu0 0
      %660 = vmatprep.subr.bf16.mxu0 0
      %661 = vmatpush1.bf16.msra.mxu0 0
      %662 = vmatprep.subr.bf16.mxu0 0
      %663 = vmatpush1.bf16.msra.mxu0 0
      %664 = vmatprep.subr.bf16.mxu0 0
      %665 = vmatpush1.bf16.msra.mxu0 0
      %666 = vmatprep.subr.bf16.mxu0 0
      %667 = vmatpush1.bf16.msra.mxu0 0
      %668 = vmatprep.subr.bf16.mxu0 0
      %669 = vmatpush1.bf16.msra.mxu0 0
      %670 = vmatprep.subr.bf16.mxu0 0
      %671 = vmatpush1.bf16.msra.mxu0 0
      %672 = vmatprep.mubr.bf16.mxu0 0
      %673 = vmatmul.mubr.bf16.gmra.mrb[0].mxu0 %v539
      %v674 = vpop.f32.mrb[0].mxu0
      %v675 = vadd.f32 0.0, %v674
      %v676 = vpop.f32.mrb[0].mxu0
      %v677 = vpop.f32.mrb[0].mxu0
      %v678 = vpop.f32.mrb[0].mxu0
      %679 = vdwg.mxu0
      %v680 = vadd.f32 %v623, %v675
      %v681 = vxor.u32 %v680, 2147483648
      %v682 = vmul.f32 %v681, 1.442695
      %v683 = vpow.pop %v682
      %v684 = vadd.f32 %v683, 1.0
      %v685 = vrcp.pop %v684
      %v686 = vmul.f32 1.0, %v685
      %v687 = vtanh.pop %v680
      %v688 = vmul.f32 %v686, %v448
      %690 = vrot.lane.b32.xlu0 %v687, 32
      %v691 = vpop.permute.xlu0 %690
      %v693 = vmul.f32 %v686, %v691
      %695 = vrot.lane.b32.xlu0 %v693, 32
      %v696 = vpop.permute.xlu0 %695
      %v698 = vadd.f32 %v688, %v696
      %v699 = vtanh.pop %v698
      %701 = vrot.lane.b32.xlu0 %v699, 32
      %v702 = vpop.permute.xlu0 %701
      %v704 = vmul.f32 %v686, %v702
      %v705 = vpack.c.bf16 %v704, %v704
      %v706 = vld [vmem:[#allocation9] sm:$0xf]
      %v707 = vld [vmem:[#allocation9 + $0x4] sm:$0xf]
      %v708 = vld [vmem:[#allocation9 + $0x8] sm:$0xf]
      %v709 = vld [vmem:[#allocation9 + $0xc] sm:$0xf]
      %v710 = vpack.c.bf16 %v612, %v612
      %v711 = vld [vmem:[#allocation10] sm:$0xf]
      %v712 = vld [vmem:[#allocation10 + $0x4] sm:$0xf]
      %v713 = vld [vmem:[#allocation10 + $0x8] sm:$0xf]
      %v714 = vld [vmem:[#allocation10 + $0xc] sm:$0xf]
      %716 = vrot.lane.b32.xlu0 %v710, 64
      %v717 = vpop.permute.xlu0 %716
      %v722 = vunpack.c.l.b16 %v711
      %v723 = vunpack.c.l.b16 %v712
      %v724 = vunpack.c.l.b16 %v713
      %v725 = vunpack.c.l.b16 %v714
      %v726 = vpack.c.b16 %v723, %v722
      %v727 = vpack.c.b16 %v725, %v724
      %v731 = vsel %vm123, %v717, 0
      %733 = vmatprep.subr.bf16.mxu0 0
      %734 = vmatpush1.bf16.msra.mxu0 %v726
      %735 = vmatprep.subr.bf16.mxu0 0
      %736 = vmatpush1.bf16.msra.mxu0 %v727
      %737 = vmatprep.subr.bf16.mxu0 0
      %738 = vmatpush1.bf16.msra.mxu0 0
      %739 = vmatprep.subr.bf16.mxu0 0
      %740 = vmatpush1.bf16.msra.mxu0 0
      %741 = vmatprep.subr.bf16.mxu0 0
      %742 = vmatpush1.bf16.msra.mxu0 0
      %743 = vmatprep.subr.bf16.mxu0 0
      %744 = vmatpush1.bf16.msra.mxu0 0
      %745 = vmatprep.subr.bf16.mxu0 0
      %746 = vmatpush1.bf16.msra.mxu0 0
      %747 = vmatprep.subr.bf16.mxu0 0
      %748 = vmatpush1.bf16.msra.mxu0 0
      %749 = vmatprep.subr.bf16.mxu0 0
      %750 = vmatpush1.bf16.msra.mxu0 0
      %751 = vmatprep.subr.bf16.mxu0 0
      %752 = vmatpush1.bf16.msra.mxu0 0
      %753 = vmatprep.subr.bf16.mxu0 0
      %754 = vmatpush1.bf16.msra.mxu0 0
      %755 = vmatprep.subr.bf16.mxu0 0
      %756 = vmatpush1.bf16.msra.mxu0 0
      %757 = vmatprep.subr.bf16.mxu0 0
      %758 = vmatpush1.bf16.msra.mxu0 0
      %759 = vmatprep.subr.bf16.mxu0 0
      %760 = vmatpush1.bf16.msra.mxu0 0
      %761 = vmatprep.subr.bf16.mxu0 0
      %762 = vmatpush1.bf16.msra.mxu0 0
      %763 = vmatprep.subr.bf16.mxu0 0
      %764 = vmatpush1.bf16.msra.mxu0 0
      %765 = vmatprep.mubr.bf16.mxu0 0
      %766 = vmatmul.mubr.bf16.gmra.mrb[0].mxu0 %v731
      %v767 = vpop.f32.mrb[0].mxu0
      %v768 = vadd.f32 0.0, %v767
      %v769 = vpop.f32.mrb[0].mxu0
      %v770 = vpop.f32.mrb[0].mxu0
      %v771 = vpop.f32.mrb[0].mxu0
      %772 = vdwg.mxu0
      %774 = vrot.lane.b32.xlu0 %v705, 64
      %v775 = vpop.permute.xlu0 %774
      %v780 = vunpack.c.l.b16 %v706
      %v781 = vunpack.c.l.b16 %v707
      %v782 = vunpack.c.l.b16 %v708
      %v783 = vunpack.c.l.b16 %v709
      %v784 = vpack.c.b16 %v781, %v780
      %v785 = vpack.c.b16 %v783, %v782
      %v789 = vsel %vm123, %v775, 0
      %791 = vmatprep.subr.bf16.mxu0 0
      %792 = vmatpush1.bf16.msra.mxu0 %v784
      %793 = vmatprep.subr.bf16.mxu0 0
      %794 = vmatpush1.bf16.msra.mxu0 %v785
      %795 = vmatprep.subr.bf16.mxu0 0
      %796 = vmatpush1.bf16.msra.mxu0 0
      %797 = vmatprep.subr.bf16.mxu0 0
      %798 = vmatpush1.bf16.msra.mxu0 0
      %799 = vmatprep.subr.bf16.mxu0 0
      %800 = vmatpush1.bf16.msra.mxu0 0
      %801 = vmatprep.subr.bf16.mxu0 0
      %802 = vmatpush1.bf16.msra.mxu0 0
      %803 = vmatprep.subr.bf16.mxu0 0
      %804 = vmatpush1.bf16.msra.mxu0 0
      %805 = vmatprep.subr.bf16.mxu0 0
      %806 = vmatpush1.bf16.msra.mxu0 0
      %807 = vmatprep.subr.bf16.mxu0 0
      %808 = vmatpush1.bf16.msra.mxu0 0
      %809 = vmatprep.subr.bf16.mxu0 0
      %810 = vmatpush1.bf16.msra.mxu0 0
      %811 = vmatprep.subr.bf16.mxu0 0
      %812 = vmatpush1.bf16.msra.mxu0 0
      %813 = vmatprep.subr.bf16.mxu0 0
      %814 = vmatpush1.bf16.msra.mxu0 0
      %815 = vmatprep.subr.bf16.mxu0 0
      %816 = vmatpush1.bf16.msra.mxu0 0
      %817 = vmatprep.subr.bf16.mxu0 0
      %818 = vmatpush1.bf16.msra.mxu0 0
      %819 = vmatprep.subr.bf16.mxu0 0
      %820 = vmatpush1.bf16.msra.mxu0 0
      %821 = vmatprep.subr.bf16.mxu0 0
      %822 = vmatpush1.bf16.msra.mxu0 0
      %823 = vmatprep.mubr.bf16.mxu0 0
      %824 = vmatmul.mubr.bf16.gmra.mrb[0].mxu0 %v789
      %v825 = vpop.f32.mrb[0].mxu0
      %v826 = vadd.f32 %v768, %v825
      %v827 = vpop.f32.mrb[0].mxu0
      %v828 = vpop.f32.mrb[0].mxu0
      %v829 = vpop.f32.mrb[0].mxu0
      %830 = vdwg.mxu0
      %v831 = vld [vmem:[%s4] sm:$0x1]
      %v833 = vlaneseq
      %v834 = vshrl.u32 %v833, 7
      %v835 = vsub.s32 0, %v834
      %v836 = vrot.slane %v831, %v835
      %v838 = vadd.f32 %v826, %v836
      %v839 = vxor.u32 %v838, 2147483648
      %v840 = vmul.f32 %v839, 1.442695
      %v841 = vpow.pop %v840
      %v842 = vadd.f32 %v841, 1.0
      %v843 = vrcp.pop %v842
      %v844 = vmul.f32 1.0, %v843
      %v845 = vtanh.pop %v838
      %v846 = vmul.f32 %v844, %v606
      %848 = vrot.lane.b32.xlu0 %v845, 32
      %v849 = vpop.permute.xlu0 %848
      %v851 = vmul.f32 %v844, %v849
      %853 = vrot.lane.b32.xlu0 %v851, 32
      %v854 = vpop.permute.xlu0 %853
      %v856 = vadd.f32 %v846, %v854
      %v857 = vtanh.pop %v856
      %859 = vrot.lane.b32.xlu0 %v857, 32
      %v860 = vpop.permute.xlu0 %859
      %v862 = vmul.f32 %v844, %v860
      %864 = vrot.lane.b32.xlu0 %v862, 64
      %v865 = vpop.permute.xlu0 %864
      %s867 = smul.u32 %s620, 2
      %s868 = scalar_lea.vmem [#allocation12], %s867
      %869 = vst.msk [vmem:[%s868] sm:$0x3] %vm368, %v865
      %s870 = sadd.s32 %s102, 3
      %s871 = scalar_lea.vmem [#allocation4], %s870
      %v872 = vld [vmem:[%s871] sm:$0x1]
      %v873 = vunpack.c.l.bf16 %v872
      %v874 = vld [vmem:[#allocation7] sm:$0xf]
      %v875 = vld [vmem:[#allocation7 + $0x4] sm:$0xf]
      %v876 = vld [vmem:[#allocation7 + $0x8] sm:$0xf]
      %v877 = vld [vmem:[#allocation7 + $0xc] sm:$0xf]
      %v882 = vunpack.c.l.b16 %v874
      %v883 = vunpack.c.l.b16 %v875
      %v884 = vunpack.c.l.b16 %v876
      %v885 = vunpack.c.l.b16 %v877
      %v886 = vpack.c.b16 %v883, %v882
      %v887 = vpack.c.b16 %v885, %v884
      %890 = vmatprep.subr.bf16.mxu0 0
      %891 = vmatpush1.bf16.msra.mxu0 %v886
      %892 = vmatprep.subr.bf16.mxu0 0
      %893 = vmatpush1.bf16.msra.mxu0 %v887
      %894 = vmatprep.subr.bf16.mxu0 0
      %895 = vmatpush1.bf16.msra.mxu0 0
      %896 = vmatprep.subr.bf16.mxu0 0
      %897 = vmatpush1.bf16.msra.mxu0 0
      %898 = vmatprep.subr.bf16.mxu0 0
      %899 = vmatpush1.bf16.msra.mxu0 0
      %900 = vmatprep.subr.bf16.mxu0 0
      %901 = vmatpush1.bf16.msra.mxu0 0
      %902 = vmatprep.subr.bf16.mxu0 0
      %903 = vmatpush1.bf16.msra.mxu0 0
      %904 = vmatprep.subr.bf16.mxu0 0
      %905 = vmatpush1.bf16.msra.mxu0 0
      %906 = vmatprep.subr.bf16.mxu0 0
      %907 = vmatpush1.bf16.msra.mxu0 0
      %908 = vmatprep.subr.bf16.mxu0 0
      %909 = vmatpush1.bf16.msra.mxu0 0
      %910 = vmatprep.subr.bf16.mxu0 0
      %911 = vmatpush1.bf16.msra.mxu0 0
      %912 = vmatprep.subr.bf16.mxu0 0
      %913 = vmatpush1.bf16.msra.mxu0 0
      %914 = vmatprep.subr.bf16.mxu0 0
      %915 = vmatpush1.bf16.msra.mxu0 0
      %916 = vmatprep.subr.bf16.mxu0 0
      %917 = vmatpush1.bf16.msra.mxu0 0
      %918 = vmatprep.subr.bf16.mxu0 0
      %919 = vmatpush1.bf16.msra.mxu0 0
      %920 = vmatprep.subr.bf16.mxu0 0
      %921 = vmatpush1.bf16.msra.mxu0 0
      %922 = vmatprep.mubr.bf16.mxu0 0
      %923 = vmatmul.mubr.bf16.gmra.mrb[0].mxu0 %v789
      %v924 = vpop.f32.mrb[0].mxu0
      %v925 = vadd.f32 0.0, %v924
      %v926 = vpop.f32.mrb[0].mxu0
      %v927 = vpop.f32.mrb[0].mxu0
      %v928 = vpop.f32.mrb[0].mxu0
      %929 = vdwg.mxu0
      %v930 = vadd.f32 %v873, %v925
      %v931 = vxor.u32 %v930, 2147483648
      %v932 = vmul.f32 %v931, 1.442695
      %v933 = vpow.pop %v932
      %v934 = vadd.f32 %v933, 1.0
      %v935 = vrcp.pop %v934
      %v936 = vmul.f32 1.0, %v935
      %v937 = vtanh.pop %v930
      %v938 = vmul.f32 %v936, %v698
      %940 = vrot.lane.b32.xlu0 %v937, 32
      %v941 = vpop.permute.xlu0 %940
      %v943 = vmul.f32 %v936, %v941
      %945 = vrot.lane.b32.xlu0 %v943, 32
      %v946 = vpop.permute.xlu0 %945
      %v948 = vadd.f32 %v938, %v946
      %v949 = vtanh.pop %v948
      %951 = vrot.lane.b32.xlu0 %v949, 32
      %v952 = vpop.permute.xlu0 %951
      %v954 = vmul.f32 %v936, %v952
      %v955 = vpack.c.bf16 %v954, %v954
      %v956 = vld [vmem:[#allocation9] sm:$0xf]
      %v957 = vld [vmem:[#allocation9 + $0x4] sm:$0xf]
      %v958 = vld [vmem:[#allocation9 + $0x8] sm:$0xf]
      %v959 = vld [vmem:[#allocation9 + $0xc] sm:$0xf]
      %v960 = vpack.c.bf16 %v862, %v862
      %v961 = vld [vmem:[#allocation10] sm:$0xf]
      %v962 = vld [vmem:[#allocation10 + $0x4] sm:$0xf]
      %v963 = vld [vmem:[#allocation10 + $0x8] sm:$0xf]
      %v964 = vld [vmem:[#allocation10 + $0xc] sm:$0xf]
      %966 = vrot.lane.b32.xlu0 %v960, 64
      %v967 = vpop.permute.xlu0 %966
      %v972 = vunpack.c.l.b16 %v961
      %v973 = vunpack.c.l.b16 %v962
      %v974 = vunpack.c.l.b16 %v963
      %v975 = vunpack.c.l.b16 %v964
      %v976 = vpack.c.b16 %v973, %v972
      %v977 = vpack.c.b16 %v975, %v974
      %v981 = vsel %vm123, %v967, 0
      %983 = vmatprep.subr.bf16.mxu0 0
      %984 = vmatpush1.bf16.msra.mxu0 %v976
      %985 = vmatprep.subr.bf16.mxu0 0
      %986 = vmatpush1.bf16.msra.mxu0 %v977
      %987 = vmatprep.subr.bf16.mxu0 0
      %988 = vmatpush1.bf16.msra.mxu0 0
      %989 = vmatprep.subr.bf16.mxu0 0
      %990 = vmatpush1.bf16.msra.mxu0 0
      %991 = vmatprep.subr.bf16.mxu0 0
      %992 = vmatpush1.bf16.msra.mxu0 0
      %993 = vmatprep.subr.bf16.mxu0 0
      %994 = vmatpush1.bf16.msra.mxu0 0
      %995 = vmatprep.subr.bf16.mxu0 0
      %996 = vmatpush1.bf16.msra.mxu0 0
      %997 = vmatprep.subr.bf16.mxu0 0
      %998 = vmatpush1.bf16.msra.mxu0 0
      %999 = vmatprep.subr.bf16.mxu0 0
      %1000 = vmatpush1.bf16.msra.mxu0 0
      %1001 = vmatprep.subr.bf16.mxu0 0
      %1002 = vmatpush1.bf16.msra.mxu0 0
      %1003 = vmatprep.subr.bf16.mxu0 0
      %1004 = vmatpush1.bf16.msra.mxu0 0
      %1005 = vmatprep.subr.bf16.mxu0 0
      %1006 = vmatpush1.bf16.msra.mxu0 0
      %1007 = vmatprep.subr.bf16.mxu0 0
      %1008 = vmatpush1.bf16.msra.mxu0 0
      %1009 = vmatprep.subr.bf16.mxu0 0
      %1010 = vmatpush1.bf16.msra.mxu0 0
      %1011 = vmatprep.subr.bf16.mxu0 0
      %1012 = vmatpush1.bf16.msra.mxu0 0
      %1013 = vmatprep.subr.bf16.mxu0 0
      %1014 = vmatpush1.bf16.msra.mxu0 0
      %1015 = vmatprep.mubr.bf16.mxu0 0
      %1016 = vmatmul.mubr.bf16.gmra.mrb[0].mxu0 %v981
      %v1017 = vpop.f32.mrb[0].mxu0
      %v1018 = vadd.f32 0.0, %v1017
      %v1019 = vpop.f32.mrb[0].mxu0
      %v1020 = vpop.f32.mrb[0].mxu0
      %v1021 = vpop.f32.mrb[0].mxu0
      %1022 = vdwg.mxu0
      %1024 = vrot.lane.b32.xlu0 %v955, 64
      %v1025 = vpop.permute.xlu0 %1024
      %v1030 = vunpack.c.l.b16 %v956
      %v1031 = vunpack.c.l.b16 %v957
      %v1032 = vunpack.c.l.b16 %v958
      %v1033 = vunpack.c.l.b16 %v959
      %v1034 = vpack.c.b16 %v1031, %v1030
      %v1035 = vpack.c.b16 %v1033, %v1032
      %v1039 = vsel %vm123, %v1025, 0
      %1041 = vmatprep.subr.bf16.mxu0 0
      %1042 = vmatpush1.bf16.msra.mxu0 %v1034
      %1043 = vmatprep.subr.bf16.mxu0 0
      %1044 = vmatpush1.bf16.msra.mxu0 %v1035
      %1045 = vmatprep.subr.bf16.mxu0 0
      %1046 = vmatpush1.bf16.msra.mxu0 0
      %1047 = vmatprep.subr.bf16.mxu0 0
      %1048 = vmatpush1.bf16.msra.mxu0 0
      %1049 = vmatprep.subr.bf16.mxu0 0
      %1050 = vmatpush1.bf16.msra.mxu0 0
      %1051 = vmatprep.subr.bf16.mxu0 0
      %1052 = vmatpush1.bf16.msra.mxu0 0
      %1053 = vmatprep.subr.bf16.mxu0 0
      %1054 = vmatpush1.bf16.msra.mxu0 0
      %1055 = vmatprep.subr.bf16.mxu0 0
      %1056 = vmatpush1.bf16.msra.mxu0 0
      %1057 = vmatprep.subr.bf16.mxu0 0
      %1058 = vmatpush1.bf16.msra.mxu0 0
      %1059 = vmatprep.subr.bf16.mxu0 0
      %1060 = vmatpush1.bf16.msra.mxu0 0
      %1061 = vmatprep.subr.bf16.mxu0 0
      %1062 = vmatpush1.bf16.msra.mxu0 0
      %1063 = vmatprep.subr.bf16.mxu0 0
      %1064 = vmatpush1.bf16.msra.mxu0 0
      %1065 = vmatprep.subr.bf16.mxu0 0
      %1066 = vmatpush1.bf16.msra.mxu0 0
      %1067 = vmatprep.subr.bf16.mxu0 0
      %1068 = vmatpush1.bf16.msra.mxu0 0
      %1069 = vmatprep.subr.bf16.mxu0 0
      %1070 = vmatpush1.bf16.msra.mxu0 0
      %1071 = vmatprep.subr.bf16.mxu0 0
      %1072 = vmatpush1.bf16.msra.mxu0 0
      %1073 = vmatprep.mubr.bf16.mxu0 0
      %1074 = vmatmul.mubr.bf16.gmra.mrb[0].mxu0 %v1039
      %v1075 = vpop.f32.mrb[0].mxu0
      %v1076 = vadd.f32 %v1018, %v1075
      %v1077 = vpop.f32.mrb[0].mxu0
      %v1078 = vpop.f32.mrb[0].mxu0
      %v1079 = vpop.f32.mrb[0].mxu0
      %1080 = vdwg.mxu0
      %v1081 = vld [vmem:[%s4] sm:$0x1]
      %v1083 = vlaneseq
      %v1084 = vshrl.u32 %v1083, 7
      %v1085 = vsub.s32 0, %v1084
      %v1086 = vrot.slane %v1081, %v1085
      %v1088 = vadd.f32 %v1076, %v1086
      %v1089 = vxor.u32 %v1088, 2147483648
      %v1090 = vmul.f32 %v1089, 1.442695
      %v1091 = vpow.pop %v1090
      %v1092 = vadd.f32 %v1091, 1.0
      %v1093 = vrcp.pop %v1092
      %v1094 = vmul.f32 1.0, %v1093
      %v1095 = vtanh.pop %v1088
      %v1096 = vmul.f32 %v1094, %v856
      %1098 = vrot.lane.b32.xlu0 %v1095, 32
      %v1099 = vpop.permute.xlu0 %1098
      %v1101 = vmul.f32 %v1094, %v1099
      %1103 = vrot.lane.b32.xlu0 %v1101, 32
      %v1104 = vpop.permute.xlu0 %1103
      %v1106 = vadd.f32 %v1096, %v1104
      %v1107 = vtanh.pop %v1106
      %1109 = vrot.lane.b32.xlu0 %v1107, 32
      %v1110 = vpop.permute.xlu0 %1109
      %v1112 = vmul.f32 %v1094, %v1110
      %1114 = vrot.lane.b32.xlu0 %v1112, 64
      %v1115 = vpop.permute.xlu0 %1114
      %s1117 = smul.u32 %s870, 2
      %s1118 = scalar_lea.vmem [#allocation12], %s1117
      %1119 = vst.msk [vmem:[%s1118] sm:$0x3] %vm368, %v1115
      %v1122 = vunpack.c.l.s4 1983009808
      %v1123 = vunpack.c.0.s8 %v1122
      %v1124 = vlaneseq
      %v1125 = vshrl.u32 %v1124, 7
      %v1126 = vsub.s32 %v1123, %v1125
      %v1127 = vrot.slane %v954, %v1126
      %1128 = vrot.lane.b32.xlu0 %v1127, 64
      %v1129 = vpop.permute.xlu0 %1128
      %v1133 = vunpack.c.l.s4 1983009808
      %v1134 = vunpack.c.0.s8 %v1133
      %v1135 = vlaneseq
      %v1136 = vshrl.u32 %v1135, 7
      %v1137 = vsub.s32 %v1134, %v1136
      %v1138 = vrot.slane %v948, %v1137
      %1139 = vrot.lane.b32.xlu0 %v1138, 96
      %v1140 = vpop.permute.xlu0 %1139
      %1143 = vrot.lane.b32.xlu0 %v1106, 96
      %v1144 = vpop.permute.xlu0 %1143
    $region46: #{tpu_custom_call.1} parent=1 // loop_footer
      %s97 = sadd.s32 1, %s93
    $region47: #{tpu_custom_call.1} parent=1 // loop_footer_branch
      %92 = sbr.rel target = $region43
    $region48: #{tpu_custom_call.1} parent=1 // loop_exit
      _
    %vm1146 = vcmask 254976
    %1147 = vst.msk [vmem:[#allocation2] sm:$0x3] %vm1146, %v98
    %1148 = vst.msk [vmem:[#allocation3] sm:$0x3] %vm1146, %v100
    %1149 = vst.msk [vmem:[%s87] sm:$0x3] %vm1146, %v99
    %1150 = vst.msk [vmem:[%s90] sm:$0x3] %vm1146, %v101
    // Predicated region
    $region49: #{tpu_custom_call.1} parent=1 // pred_check
      _
    $region50: #{tpu_custom_call.1} parent=1 // pred_check_branch
      %1152 = sbr.rel (0) target = $region52
    $region51: #{tpu_custom_call.1} parent=1 // pred_region
      %s1154 = ssub.s32 256, 256
      %1155 = vsyncadd [#allocation6], %s1154
      %s1156 = sshll.u32 [#allocation12], 4
      %s1157 = int_to_ptr.vmem [resolvable:$true] %s1156
      %1162 = dma.vmem_to_hbm [thread:$0]  %s1157, 256, %s5, [#allocation6], 32, 32, 2
    $region52: #{tpu_custom_call.1} parent=1 // pred_fallthru
      _
    // Predicated region
    $region53: #{tpu_custom_call.1} parent=1 // pred_check
      _
    $region54: #{tpu_custom_call.1} parent=1 // pred_check_branch
      %1164 = sbr.rel (0) target = $region56
    $region55: #{tpu_custom_call.1} parent=1 // pred_region
      %1165 = dma.done [#allocation6], 256
    $region56: #{tpu_custom_call.1} parent=1 // pred_fallthru
      _
    %1166 = vsyncpa [#allocation5], 1
    %1167 = vsyncpa [#allocation8], 1
    %1168 = vsyncpa [#allocation11], 1
    %1169 = vsyncpa [#allocation6], 1

</llo_original>
